<compile_context>
chip_gen: v7x
topology: tpu7x:2x2x1
jax: 0.10.0
libtpu: 0.0.40
codegen_flags: <defaults>
</compile_context>

<pallas_src>
import functools

import numpy as np

import jax
import jax.numpy as jnp
from jax.experimental import pallas as pl
from jax.experimental.pallas import tpu as pltpu


# ----------------------------------------------------------------------------
# Wrapper-side weight preprocessing (trace-time; all arrays are tiny)
# ----------------------------------------------------------------------------
def _perm_shift_matrix(S, dil):
    """Q[kx, x_out, slot] = 1 iff padded-x position (x_out + kx*dil) maps to `slot`.

    The padded-x axis is *permuted*: the S interior positions occupy slots
    0..S-1 (lane offset 0 in the halo scratches) and the 2*dil halo positions
    sit at the tail.  This lets the kernel write the interior with full-width,
    unrotated lane stores while the Toeplitz weight rows absorb the permutation.
    """
    L = S + 2 * dil
    halo = [p for p in range(L) if p < dil or p >= S + dil]

    def slot(p):
        return p - dil if dil <= p < S + dil else S + halo.index(p)

    Q = np.zeros((3, S, L), np.float32)
    for kx in range(3):
        for x in range(S):
            Q[kx, x, slot(x + kx * dil)] = 1.0
    return jnp.asarray(Q)


def _toeplitz_weight(w, S, dil, kpad):
    """(27, Cin, Cout) conv taps -> (9*kpad, S*Cout) stacked row-Toeplitz weight.

    The kernel concatenates the nine (kz, ky) input slabs along K (each padded
    to `kpad` lanes) and contracts them with this weight in ONE MXU matmul per
    conv stage.
    """
    cin, cout = w.shape[1], w.shape[2]
    L = S + 2 * dil
    w_r = w.reshape(3, 3, 3, cin, cout)                  # (kz, ky, kx, ci, co)
    Q = _perm_shift_matrix(S, dil)                       # (kx, x, slot)
    big = jnp.einsum("kxp,zykco->zypcxo", Q, w_r)        # (kz,ky,slot,ci,x,co)
    big = big.reshape(9, L * cin, S * cout)
    big = jnp.pad(big, ((0, 0), (0, kpad - L * cin), (0, 0)))
    return big.reshape(9 * kpad, S * cout)


# ----------------------------------------------------------------------------
# Fused Pallas kernel: conv1 -> IN -> lrelu -> conv2 -> IN -> +res -> lrelu
# ----------------------------------------------------------------------------
def _atrous_block_kernel(x_ref, w1_ref, w2_ref, b_ref, p_ref,
                         o_ref, pad1_ref, pad2_ref,
                         *, S, Cout, K1p, K2p, neg_slope, eps):
    f32 = jnp.float32
    bf16 = jnp.bfloat16
    NS = S * Cout
    M = S * S
    inv_npts = 1.0 / float(S * S * S)

    def inst_norm(acc):
        # Per-(batch, channel) statistics over all S^3 voxels, kept in f32.
        # One M=2 matmul with the constant pool+broadcast matrix P both
        # reduces over x inside the lane dim and broadcasts the per-channel
        # totals back to every lane (replaces four M=1 matmuls per norm).
        colsum = jnp.sum(acc, axis=0, keepdims=True)                 # (1, NS)
        colsq = jnp.sum(acc * acc, axis=0, keepdims=True)            # (1, NS)
        stats = jnp.concatenate([colsum, colsq], axis=0)             # (2, NS)
        pooled = jnp.dot(stats, p_ref[...], preferred_element_type=f32)
        mean_b = pooled[0:1] * inv_npts                              # (1, NS)
        var_b = jnp.maximum(pooled[1:2] * inv_npts - mean_b * mean_b, 0.0)
        scale_b = jax.lax.rsqrt(var_b + eps)
        return (acc - mean_b) * scale_b

    def lrelu(z):
        return jnp.where(z >= 0, z, neg_slope * z)

    # --- zero ONLY the halo frame (interior rows incl. their tail lanes are
    #     fully overwritten below). -------------------------------------------
    pad1_ref[0:1, :, :] = jnp.zeros((1, S + 2, K1p), f32)
    pad1_ref[S + 1:S + 2, :, :] = jnp.zeros((1, S + 2, K1p), f32)
    pad1_ref[1:S + 1, 0:1, :] = jnp.zeros((S, 1, K1p), f32)
    pad1_ref[1:S + 1, S + 1:S + 2, :] = jnp.zeros((S, 1, K1p), f32)
    pad2_ref[0:3, :, :] = jnp.zeros((3, S + 6, K2p), f32)
    pad2_ref[S + 3:S + 6, :, :] = jnp.zeros((3, S + 6, K2p), f32)
    pad2_ref[3:S + 3, 0:3, :] = jnp.zeros((S, 3, K2p), f32)
    pad2_ref[3:S + 3, S + 3:S + 6, :] = jnp.zeros((S, 3, K2p), f32)

    # Interior write: full 128-lane, lane-offset-0 store.  The wrapper already
    # zero-padded x's minor dim, so the x halo lanes land as zeros.
    x_val = x_ref[0]                                                 # (S,S,K1p)
    pad1_ref[1:1 + S, 1:1 + S, :] = x_val

    # --- stage 1: conv 3x3x3 dil=1 (+ fused residual projection) -------------
    slabs = []
    for kz in range(3):
        for ky in range(3):
            slabs.append(
                pad1_ref[kz:kz + S, ky:ky + S, :].reshape(M, K1p).astype(bf16))
    cat1 = jnp.concatenate(slabs, axis=-1)                           # (M, 9*K1p)
    both = jnp.dot(cat1, w1_ref[...], preferred_element_type=f32)    # (M, 2*NS)
    acc1 = both[:, :NS]                                              # conv1
    res = both[:, NS:] + b_ref[...]                                  # residual
    act1 = lrelu(inst_norm(acc1))                                    # (M, NS) f32

    # Stage-1 activation stays in VMEM: write it (with zero x-halo lanes)
    # straight into the dilation-3 padded scratch -- no HBM round trip.
    act1_p = jnp.concatenate(
        [act1, jnp.zeros((M, K2p - NS), f32)], axis=-1).reshape(S, S, K2p)
    pad2_ref[3:3 + S, 3:3 + S, :] = act1_p

    # --- stage 2: conv 3x3x3 dil=3 (single folded MXU matmul) ----------------
    slabs = []
    for kz in range(3):
        for ky in range(3):
            slabs.append(
                pad2_ref[3 * kz:3 * kz + S, 3 * ky:3 * ky + S, :]
                .reshape(M, K2p).astype(bf16))
    cat2 = jnp.concatenate(slabs, axis=-1)                           # (M, 9*K2p)
    acc2 = jnp.dot(cat2, w2_ref[...], preferred_element_type=f32)    # (M, NS)

    out = lrelu(inst_norm(acc2) + res)
    # NOTE: NS = S*Cout is the matmul N dim; for realistic feature counts
    # (S*Cout >= 128) this store is already lane-dense.  At the demo size the
    # writeback is only 16 KiB/step, so an extra (M,NS)->(M*NS/128,128)
    # relayout would cost as much as the masked stores it removes.
    o_ref[0] = out.astype(o_ref.dtype)


# ----------------------------------------------------------------------------
# Wrapper
# ----------------------------------------------------------------------------
def atrous_ii_block(x, w1, w2, w_res, b_res, *, leakiness=0.0, eps=1e-5):
    """Forward pass of AtrousIIBlock on a dense NDHWC tensor.

    x:     (B, S, S, S, Cin)  float32
    w1:    (27, Cin, Cout)    conv1 taps, enumerated (kz, ky, kx) row-major
    w2:    (27, Cout, Cout)   conv2 taps
    w_res: (Cin, Cout), b_res: (1, Cout)   residual MinkowskiLinear
    """
    B, S, _, _, Cin = x.shape
    Cout = w1.shape[-1]
    NS = S * Cout
    M = S * S
    K1p, K2p = 128, 128          # per-tap K padded to the 128-lane width
    assert (S + 2) * Cin <= K1p and (S + 6) * Cout <= K2p, "per-tap K exceeds 128"

    # Row-Toeplitz conv weights (bf16 MXU operands).  The residual projection
    # is folded into the centre-tap block of the stage-1 weight as extra
    # output columns (the (kz=1, ky=1) slab is exactly x).
    w1_big = _toeplitz_weight(w1, S, 1, K1p)                         # (9*K1p, NS)
    wres_cols = jnp.zeros((9 * K1p, NS), jnp.float32)
    wres_cols = wres_cols.at[4 * K1p:4 * K1p + S * Cin, :].set(
        jnp.kron(jnp.eye(S, dtype=jnp.float32), w_res))
    w1_aug = jnp.concatenate([w1_big, wres_cols], axis=1).astype(jnp.bfloat16)
    w2_big = _toeplitz_weight(w2, S, 3, K2p).astype(jnp.bfloat16)    # (9*K2p, NS)

    b_big = jnp.tile(b_res.reshape(1, Cout), (1, S)).astype(jnp.float32)  # (1, NS)
    # Pool+broadcast matrix for the instance-norm statistics (f32).
    lanes = np.arange(NS)
    p_mat = jnp.asarray((lanes[:, None] % Cout == lanes[None, :] % Cout)
                        .astype(np.float32))                         # (NS, NS)

    # Lane-aligned input: flatten (x, channel) into the minor dim and pad it
    # to 128 so the in-kernel interior store is a full, unrotated vreg store.
    x_flat = jnp.pad(x.reshape(B, S, S, S * Cin),
                     ((0, 0), (0, 0), (0, 0), (0, K1p - S * Cin)))

    kernel = functools.partial(_atrous_block_kernel, S=S, Cout=Cout,
                               K1p=K1p, K2p=K2p, neg_slope=leakiness, eps=eps)

    out_flat = pl.pallas_call(
        kernel,
        out_shape=jax.ShapeDtypeStruct((B, M, NS), jnp.float32),
        grid_spec=pltpu.PrefetchScalarGridSpec(
            num_scalar_prefetch=0,
            grid=(B,),   # >= 2 "parallel" steps keeps both v7x TensorCores busy
            in_specs=[
                pl.BlockSpec((1, S, S, K1p), lambda b: (b, 0, 0, 0)),
                # Constant-index weight specs; bf16 keeps the double-buffered
                # footprint ~0.9 MiB.  For larger S/C: pipeline_mode=
                # pl.Buffered(1) here (fetched once) or stream w2 from HBM.
                pl.BlockSpec((9 * K1p, 2 * NS), lambda b: (0, 0)),
                pl.BlockSpec((9 * K2p, NS), lambda b: (0, 0)),
                pl.BlockSpec((1, NS), lambda b: (0, 0)),
                pl.BlockSpec((NS, NS), lambda b: (0, 0)),
            ],
            out_specs=pl.BlockSpec((1, M, NS), lambda b: (b, 0, 0)),
            scratch_shapes=[
                pltpu.VMEM((S + 2, S + 2, K1p), jnp.float32),   # dil-1 halo
                pltpu.VMEM((S + 6, S + 6, K2p), jnp.float32),   # dil-3 halo
            ],
        ),
        compiler_params=pltpu.CompilerParams(
            dimension_semantics=("parallel",),
            # ~2 MiB live (bf16 weights + halo scratches + temporaries);
            # 32 MiB is a safe explicit cap on v5e/v6e/v7x (64 MiB) alike.
            vmem_limit_bytes=32 * 1024 * 1024,
        ),
    )(x_flat, w1_aug, w2_big, b_big, p_mat)

    return out_flat.reshape(B, S, S, S, Cout)


# ----------------------------------------------------------------------------
# Pure-JAX reference (same dense semantics) for a correctness check
# ----------------------------------------------------------------------------
def _reference(x, w1, w2, w_res, b_res, *, leakiness=0.0, eps=1e-5):
    def conv3d(inp, w, dil):
        k = w.reshape(3, 3, 3, w.shape[-2], w.shape[-1])
        return jax.lax.conv_general_dilated(
            inp, k, window_strides=(1, 1, 1),
            padding=[(dil, dil)] * 3, rhs_dilation=(dil, dil, dil),
            dimension_numbers=("NDHWC", "DHWIO", "NDHWC"))

    def inorm(z):
        m = jnp.mean(z, axis=(1, 2, 3), keepdims=True)
        v = jnp.mean(jnp.square(z - m), axis=(1, 2, 3), keepdims=True)
        return (z - m) * jax.lax.rsqrt(v + eps)

    def lrelu(z):
        return jnp.where(z >= 0, z, leakiness * z)

    residual = jnp.dot(x, w_res) + b_res.reshape(-1)
    o = lrelu(inorm(conv3d(x, w1, 1)))
    o = inorm(conv3d(o, w2, 3)) + residual
    return lrelu(o)


# ----------------------------------------------------------------------------
if __name__ == "__main__":
    # Small shapes: batch=2, spatial=8^3, in_features=4, out_features=8, D=3.
    B, S, Cin, Cout = 2, 8, 4, 8
    leakiness = 0.0  # module default -> plain ReLU

    key = jax.random.PRNGKey(0)
    k_x, k_w1, k_w2, k_wr, k_br = jax.random.split(key, 5)

    x = jax.random.normal(k_x, (B, S, S, S, Cin), dtype=jnp.float32)
    # MinkowskiConvolution kernel: (kernel_volume, in, out), no bias.
    w1 = 0.1 * jax.random.normal(k_w1, (27, Cin, Cout), dtype=jnp.float32)
    w2 = 0.1 * jax.random.normal(k_w2, (27, Cout, Cout), dtype=jnp.float32)
    # MinkowskiLinear (in_features != out_features -> residual projection).
    w_res = 0.1 * jax.random.normal(k_wr, (Cin, Cout), dtype=jnp.float32)
    b_res = 0.1 * jax.random.normal(k_br, (1, Cout), dtype=jnp.float32)

    fwd = jax.jit(functools.partial(atrous_ii_block, leakiness=leakiness))
    out = jax.block_until_ready(fwd(x, w1, w2, w_res, b_res))

    ref = jax.block_until_ready(
        _reference(x, w1, w2, w_res, b_res, leakiness=leakiness))

    assert out.shape == (B, S, S, S, Cout)
    # bf16 MXU operands with f32 accumulation: expected max abs error ~1e-2.
    assert jnp.max(jnp.abs(out - ref)) < 5e-2, "mismatch vs pure-JAX reference"

    # TODO(synk): MinkowskiEngine operates on sparse coordinate sets; this is
    # the exact dense-grid analog (instance norm covers all dense voxels), and
    # the in_features == out_features Identity-residual case is not handled.
    print("KERNEL_OK")
</pallas_src>

<mosaic_0001>
module attributes {stable_mosaic.version = 11 : i64} {
  func.func @_atrous_block_kernel(%arg0: i32, %arg1: memref<1x8x8x128xf32, #tpu.memory_space<vmem>>, %arg2: memref<1152x128xbf16, #tpu.memory_space<vmem>>, %arg3: memref<1152x64xbf16, #tpu.memory_space<vmem>>, %arg4: memref<1x64xf32, #tpu.memory_space<vmem>>, %arg5: memref<64x64xf32, #tpu.memory_space<vmem>>, %arg6: memref<1x64x64xf32, #tpu.memory_space<vmem>>, %arg7: memref<10x10x128xf32, #tpu.memory_space<vmem>>, %arg8: memref<14x14x128xf32, #tpu.memory_space<vmem>>) attributes {dimension_semantics = [#tpu.dimension_semantics<parallel>], iteration_bounds = array<i64: 2>, scalar_prefetch = 0 : i64, scratch_operands = 2 : i64, tpu.core_type = #tpu.core_type<tc>, window_params = [{transform_indices = @transform_0, window_bounds = array<i64: 1, 8, 8, 128>}, {pipeline_mode = #tpu.pipeline_mode<synchronous>, transform_indices = @transform_1, window_bounds = array<i64: 1152, 128>}, {pipeline_mode = #tpu.pipeline_mode<synchronous>, transform_indices = @transform_2, window_bounds = array<i64: 1152, 64>}, {pipeline_mode = #tpu.pipeline_mode<synchronous>, transform_indices = @transform_3, window_bounds = array<i64: 1, 64>}, {pipeline_mode = #tpu.pipeline_mode<synchronous>, transform_indices = @transform_4, window_bounds = array<i64: 64, 64>}, {transform_indices = @transform_5, window_bounds = array<i64: 1, 64, 64>}]} {
    %cst = arith.constant 0.000000e+00 : f32
    %0 = vector.broadcast %cst : f32 to vector<1x10x128xf32>
    %c0 = arith.constant 0 : index
    %c0_0 = arith.constant 0 : index
    %c0_1 = arith.constant 0 : index
    %1 = vector.load %arg7[%c0, %c0_0, %c0_1] : memref<10x10x128xf32, #tpu.memory_space<vmem>>, vector<1x10x128xf32>
    tpu.vector_store %arg7[%c0, %c0_0, %c0_1], %0 {strides = array<i32>} : memref<10x10x128xf32, #tpu.memory_space<vmem>>, vector<1x10x128xf32>,
    %cst_2 = arith.constant 0.000000e+00 : f32
    %2 = vector.broadcast %cst_2 : f32 to vector<1x10x128xf32>
    %c9 = arith.constant 9 : index
    %c0_3 = arith.constant 0 : index
    %c0_4 = arith.constant 0 : index
    %3 = vector.load %arg7[%c9, %c0_3, %c0_4] : memref<10x10x128xf32, #tpu.memory_space<vmem>>, vector<1x10x128xf32>
    tpu.vector_store %arg7[%c9, %c0_3, %c0_4], %2 {strides = array<i32>} : memref<10x10x128xf32, #tpu.memory_space<vmem>>, vector<1x10x128xf32>,
    %cst_5 = arith.constant 0.000000e+00 : f32
    %4 = vector.broadcast %cst_5 : f32 to vector<8x1x128xf32>
    %c1 = arith.constant 1 : index
    %c0_6 = arith.constant 0 : index
    %c0_7 = arith.constant 0 : index
    %5 = vector.load %arg7[%c1, %c0_6, %c0_7] : memref<10x10x128xf32, #tpu.memory_space<vmem>>, vector<8x1x128xf32>
    tpu.vector_store %arg7[%c1, %c0_6, %c0_7], %4 {strides = array<i32>} : memref<10x10x128xf32, #tpu.memory_space<vmem>>, vector<8x1x128xf32>,
    %cst_8 = arith.constant 0.000000e+00 : f32
    %6 = vector.broadcast %cst_8 : f32 to vector<8x1x128xf32>
    %c1_9 = arith.constant 1 : index
    %c9_10 = arith.constant 9 : index
    %c0_11 = arith.constant 0 : index
    %7 = vector.load %arg7[%c1_9, %c9_10, %c0_11] : memref<10x10x128xf32, #tpu.memory_space<vmem>>, vector<8x1x128xf32>
    tpu.vector_store %arg7[%c1_9, %c9_10, %c0_11], %6 {strides = array<i32>} : memref<10x10x128xf32, #tpu.memory_space<vmem>>, vector<8x1x128xf32>,
    %cst_12 = arith.constant 0.000000e+00 : f32
    %8 = vector.broadcast %cst_12 : f32 to vector<3x14x128xf32>
    %c0_13 = arith.constant 0 : index
    %c0_14 = arith.constant 0 : index
    %c0_15 = arith.constant 0 : index
    %9 = vector.load %arg8[%c0_13, %c0_14, %c0_15] : memref<14x14x128xf32, #tpu.memory_space<vmem>>, vector<3x14x128xf32>
    tpu.vector_store %arg8[%c0_13, %c0_14, %c0_15], %8 {strides = array<i32>} : memref<14x14x128xf32, #tpu.memory_space<vmem>>, vector<3x14x128xf32>,
    %cst_16 = arith.constant 0.000000e+00 : f32
    %10 = vector.broadcast %cst_16 : f32 to vector<3x14x128xf32>
    %c11 = arith.constant 11 : index
    %c0_17 = arith.constant 0 : index
    %c0_18 = arith.constant 0 : index
    %11 = vector.load %arg8[%c11, %c0_17, %c0_18] : memref<14x14x128xf32, #tpu.memory_space<vmem>>, vector<3x14x128xf32>
    tpu.vector_store %arg8[%c11, %c0_17, %c0_18], %10 {strides = array<i32>} : memref<14x14x128xf32, #tpu.memory_space<vmem>>, vector<3x14x128xf32>,
    %cst_19 = arith.constant 0.000000e+00 : f32
    %12 = vector.broadcast %cst_19 : f32 to vector<8x3x128xf32>
    %c3 = arith.constant 3 : index
    %c0_20 = arith.constant 0 : index
    %c0_21 = arith.constant 0 : index
    %13 = vector.load %arg8[%c3, %c0_20, %c0_21] : memref<14x14x128xf32, #tpu.memory_space<vmem>>, vector<8x3x128xf32>
    tpu.vector_store %arg8[%c3, %c0_20, %c0_21], %12 {strides = array<i32>} : memref<14x14x128xf32, #tpu.memory_space<vmem>>, vector<8x3x128xf32>,
    %cst_22 = arith.constant 0.000000e+00 : f32
    %14 = vector.broadcast %cst_22 : f32 to vector<8x3x128xf32>
    %c3_23 = arith.constant 3 : index
    %c11_24 = arith.constant 11 : index
    %c0_25 = arith.constant 0 : index
    %15 = vector.load %arg8[%c3_23, %c11_24, %c0_25] : memref<14x14x128xf32, #tpu.memory_space<vmem>>, vector<8x3x128xf32>
    tpu.vector_store %arg8[%c3_23, %c11_24, %c0_25], %14 {strides = array<i32>} : memref<14x14x128xf32, #tpu.memory_space<vmem>>, vector<8x3x128xf32>,
    %c0_26 = arith.constant 0 : index
    %c0_27 = arith.constant 0 : index
    %c0_28 = arith.constant 0 : index
    %c0_29 = arith.constant 0 : index
    %16 = vector.load %arg1[%c0_26, %c0_27, %c0_28, %c0_29] : memref<1x8x8x128xf32, #tpu.memory_space<vmem>>, vector<1x8x8x128xf32>
    %17 = vector.shape_cast %16 : vector<1x8x8x128xf32> to vector<8x8x128xf32>
    %c1_30 = arith.constant 1 : index
    %c1_31 = arith.constant 1 : index
    %c0_32 = arith.constant 0 : index
    %18 = vector.load %arg7[%c1_30, %c1_31, %c0_32] : memref<10x10x128xf32, #tpu.memory_space<vmem>>, vector<8x8x128xf32>
    tpu.vector_store %arg7[%c1_30, %c1_31, %c0_32], %17 {strides = array<i32>} : memref<10x10x128xf32, #tpu.memory_space<vmem>>, vector<8x8x128xf32>,
    %c0_33 = arith.constant 0 : index
    %c0_34 = arith.constant 0 : index
    %c0_35 = arith.constant 0 : index
    %19 = vector.load %arg7[%c0_33, %c0_34, %c0_35] : memref<10x10x128xf32, #tpu.memory_space<vmem>>, vector<8x8x128xf32>
    %20 = vector.shape_cast %19 : vector<8x8x128xf32> to vector<64x128xf32>
    %21 = arith.truncf %20 : vector<64x128xf32> to vector<64x128xbf16>
    %c0_36 = arith.constant 0 : index
    %c1_37 = arith.constant 1 : index
    %c0_38 = arith.constant 0 : index
    %22 = vector.load %arg7[%c0_36, %c1_37, %c0_38] : memref<10x10x128xf32, #tpu.memory_space<vmem>>, vector<8x8x128xf32>
    %23 = vector.shape_cast %22 : vector<8x8x128xf32> to vector<64x128xf32>
    %24 = arith.truncf %23 : vector<64x128xf32> to vector<64x128xbf16>
    %c0_39 = arith.constant 0 : index
    %c2 = arith.constant 2 : index
    %c0_40 = arith.constant 0 : index
    %25 = vector.load %arg7[%c0_39, %c2, %c0_40] : memref<10x10x128xf32, #tpu.memory_space<vmem>>, vector<8x8x128xf32>
    %26 = vector.shape_cast %25 : vector<8x8x128xf32> to vector<64x128xf32>
    %27 = arith.truncf %26 : vector<64x128xf32> to vector<64x128xbf16>
    %c1_41 = arith.constant 1 : index
    %c0_42 = arith.constant 0 : index
    %c0_43 = arith.constant 0 : index
    %28 = vector.load %arg7[%c1_41, %c0_42, %c0_43] : memref<10x10x128xf32, #tpu.memory_space<vmem>>, vector<8x8x128xf32>
    %29 = vector.shape_cast %28 : vector<8x8x128xf32> to vector<64x128xf32>
    %30 = arith.truncf %29 : vector<64x128xf32> to vector<64x128xbf16>
    %c1_44 = arith.constant 1 : index
    %c1_45 = arith.constant 1 : index
    %c0_46 = arith.constant 0 : index
    %31 = vector.load %arg7[%c1_44, %c1_45, %c0_46] : memref<10x10x128xf32, #tpu.memory_space<vmem>>, vector<8x8x128xf32>
    %32 = vector.shape_cast %31 : vector<8x8x128xf32> to vector<64x128xf32>
    %33 = arith.truncf %32 : vector<64x128xf32> to vector<64x128xbf16>
    %c1_47 = arith.constant 1 : index
    %c2_48 = arith.constant 2 : index
    %c0_49 = arith.constant 0 : index
    %34 = vector.load %arg7[%c1_47, %c2_48, %c0_49] : memref<10x10x128xf32, #tpu.memory_space<vmem>>, vector<8x8x128xf32>
    %35 = vector.shape_cast %34 : vector<8x8x128xf32> to vector<64x128xf32>
    %36 = arith.truncf %35 : vector<64x128xf32> to vector<64x128xbf16>
    %c2_50 = arith.constant 2 : index
    %c0_51 = arith.constant 0 : index
    %c0_52 = arith.constant 0 : index
    %37 = vector.load %arg7[%c2_50, %c0_51, %c0_52] : memref<10x10x128xf32, #tpu.memory_space<vmem>>, vector<8x8x128xf32>
    %38 = vector.shape_cast %37 : vector<8x8x128xf32> to vector<64x128xf32>
    %39 = arith.truncf %38 : vector<64x128xf32> to vector<64x128xbf16>
    %c2_53 = arith.constant 2 : index
    %c1_54 = arith.constant 1 : index
    %c0_55 = arith.constant 0 : index
    %40 = vector.load %arg7[%c2_53, %c1_54, %c0_55] : memref<10x10x128xf32, #tpu.memory_space<vmem>>, vector<8x8x128xf32>
    %41 = vector.shape_cast %40 : vector<8x8x128xf32> to vector<64x128xf32>
    %42 = arith.truncf %41 : vector<64x128xf32> to vector<64x128xbf16>
    %c2_56 = arith.constant 2 : index
    %c2_57 = arith.constant 2 : index
    %c0_58 = arith.constant 0 : index
    %43 = vector.load %arg7[%c2_56, %c2_57, %c0_58] : memref<10x10x128xf32, #tpu.memory_space<vmem>>, vector<8x8x128xf32>
    %44 = vector.shape_cast %43 : vector<8x8x128xf32> to vector<64x128xf32>
    %45 = arith.truncf %44 : vector<64x128xf32> to vector<64x128xbf16>
    %46 = tpu.concatenate %21, %24, %27, %30, %33, %36, %39, %42, %45 in 1 : vector<64x128xbf16>, vector<64x128xbf16>, vector<64x128xbf16>, vector<64x128xbf16>, vector<64x128xbf16>, vector<64x128xbf16>, vector<64x128xbf16>, vector<64x128xbf16>, vector<64x128xbf16> -> vector<64x1152xbf16>
    %c0_59 = arith.constant 0 : index
    %c0_60 = arith.constant 0 : index
    %47 = vector.load %arg2[%c0_59, %c0_60] : memref<1152x128xbf16, #tpu.memory_space<vmem>>, vector<1152x128xbf16>
    %cst_61 = arith.constant dense<0.000000e+00> : vector<64x128xf32>
    %48 = tpu.matmul %46, %47, %cst_61 {dimension_numbers = #tpu.dot_dimension_numbers<[1], [0], [0], [1], [0, 0, 1, 1], [], []>} : vector<64x1152xbf16>, vector<1152x128xbf16>, vector<64x128xf32> -> vector<64x128xf32>
    %49 = vector.extract_strided_slice %48 {offsets = [0, 0], sizes = [64, 64], strides = [1, 1]} : vector<64x128xf32> to vector<64x64xf32>
    %50 = vector.extract_strided_slice %48 {offsets = [0, 64], sizes = [64, 64], strides = [1, 1]} : vector<64x128xf32> to vector<64x64xf32>
    %c0_62 = arith.constant 0 : index
    %c0_63 = arith.constant 0 : index
    %51 = vector.load %arg4[%c0_62, %c0_63] : memref<1x64xf32, #tpu.memory_space<vmem>>, vector<1x64xf32>
    %52 = vector.broadcast %51 : vector<1x64xf32> to vector<64x64xf32>
    %53 = arith.addf %50, %52 : vector<64x64xf32>
    %cst_64 = arith.constant dense<0.000000e+00> : vector<64xf32>
    %54 = vector.multi_reduction <add>, %49, %cst_64 [0] : vector<64x64xf32> to vector<64xf32>
    %55 = vector.shape_cast %54 : vector<64xf32> to vector<1x64xf32>
    %56 = arith.mulf %49, %49 : vector<64x64xf32>
    %cst_65 = arith.constant dense<0.000000e+00> : vector<64xf32>
    %57 = vector.multi_reduction <add>, %56, %cst_65 [0] : vector<64x64xf32> to vector<64xf32>
    %58 = vector.shape_cast %57 : vector<64xf32> to vector<1x64xf32>
    %59 = tpu.concatenate %55, %58 in 0 : vector<1x64xf32>, vector<1x64xf32> -> vector<2x64xf32>
    %c0_66 = arith.constant 0 : index
    %c0_67 = arith.constant 0 : index
    %60 = vector.load %arg5[%c0_66, %c0_67] : memref<64x64xf32, #tpu.memory_space<vmem>>, vector<64x64xf32>
    %cst_68 = arith.constant dense<0.000000e+00> : vector<2x64xf32>
    %61 = tpu.matmul %59, %60, %cst_68 {dimension_numbers = #tpu.dot_dimension_numbers<[1], [0], [0], [1], [0, 0, 1, 1], [], []>} : vector<2x64xf32>, vector<64x64xf32>, vector<2x64xf32> -> vector<2x64xf32>
    %62 = vector.extract_strided_slice %61 {offsets = [0, 0], sizes = [1, 64], strides = [1, 1]} : vector<2x64xf32> to vector<1x64xf32>
    %cst_69 = arith.constant 0.001953125 : f32
    %63 = vector.broadcast %cst_69 : f32 to vector<1x64xf32>
    %64 = arith.mulf %62, %63 : vector<1x64xf32>
    %65 = vector.extract_strided_slice %61 {offsets = [1, 0], sizes = [1, 64], strides = [1, 1]} : vector<2x64xf32> to vector<1x64xf32>
    %cst_70 = arith.constant 0.001953125 : f32
    %66 = vector.broadcast %cst_70 : f32 to vector<1x64xf32>
    %67 = arith.mulf %65, %66 : vector<1x64xf32>
    %68 = arith.mulf %64, %64 : vector<1x64xf32>
    %69 = arith.subf %67, %68 : vector<1x64xf32>
    %cst_71 = arith.constant 0.000000e+00 : f32
    %70 = vector.broadcast %cst_71 : f32 to vector<1x64xf32>
    %71 = arith.maximumf %69, %70 : vector<1x64xf32>
    %cst_72 = arith.constant 9.99999974E-6 : f32
    %72 = vector.broadcast %cst_72 : f32 to vector<1x64xf32>
    %73 = arith.addf %71, %72 : vector<1x64xf32>
    %74 = math.rsqrt %73 : vector<1x64xf32>
    %75 = vector.broadcast %64 : vector<1x64xf32> to vector<64x64xf32>
    %76 = arith.subf %49, %75 : vector<64x64xf32>
    %77 = vector.broadcast %74 : vector<1x64xf32> to vector<64x64xf32>
    %78 = arith.mulf %76, %77 : vector<64x64xf32>
    %cst_73 = arith.constant 0.000000e+00 : f32
    %79 = vector.broadcast %cst_73 : f32 to vector<64x64xf32>
    %80 = arith.cmpf oge, %78, %79 : vector<64x64xf32>
    %cst_74 = arith.constant 0.000000e+00 : f32
    %81 = vector.broadcast %cst_74 : f32 to vector<64x64xf32>
    %82 = arith.mulf %81, %78 : vector<64x64xf32>
    %83 = arith.select %80, %78, %82 : vector<64x64xi1>, vector<64x64xf32>
    %cst_75 = arith.constant 0.000000e+00 : f32
    %84 = vector.broadcast %cst_75 : f32 to vector<64x64xf32>
    %85 = tpu.concatenate %83, %84 in 1 : vector<64x64xf32>, vector<64x64xf32> -> vector<64x128xf32>
    %86 = vector.shape_cast %85 : vector<64x128xf32> to vector<8x8x128xf32>
    %c3_76 = arith.constant 3 : index
    %c3_77 = arith.constant 3 : index
    %c0_78 = arith.constant 0 : index
    %87 = vector.load %arg8[%c3_76, %c3_77, %c0_78] : memref<14x14x128xf32, #tpu.memory_space<vmem>>, vector<8x8x128xf32>
    tpu.vector_store %arg8[%c3_76, %c3_77, %c0_78], %86 {strides = array<i32>} : memref<14x14x128xf32, #tpu.memory_space<vmem>>, vector<8x8x128xf32>,
    %c0_79 = arith.constant 0 : index
    %c0_80 = arith.constant 0 : index
    %c0_81 = arith.constant 0 : index
    %88 = vector.load %arg8[%c0_79, %c0_80, %c0_81] : memref<14x14x128xf32, #tpu.memory_space<vmem>>, vector<8x8x128xf32>
    %89 = vector.shape_cast %88 : vector<8x8x128xf32> to vector<64x128xf32>
    %90 = arith.truncf %89 : vector<64x128xf32> to vector<64x128xbf16>
    %c0_82 = arith.constant 0 : index
    %c3_83 = arith.constant 3 : index
    %c0_84 = arith.constant 0 : index
    %91 = vector.load %arg8[%c0_82, %c3_83, %c0_84] : memref<14x14x128xf32, #tpu.memory_space<vmem>>, vector<8x8x128xf32>
    %92 = vector.shape_cast %91 : vector<8x8x128xf32> to vector<64x128xf32>
    %93 = arith.truncf %92 : vector<64x128xf32> to vector<64x128xbf16>
    %c0_85 = arith.constant 0 : index
    %c6 = arith.constant 6 : index
    %c0_86 = arith.constant 0 : index
    %94 = vector.load %arg8[%c0_85, %c6, %c0_86] : memref<14x14x128xf32, #tpu.memory_space<vmem>>, vector<8x8x128xf32>
    %95 = vector.shape_cast %94 : vector<8x8x128xf32> to vector<64x128xf32>
    %96 = arith.truncf %95 : vector<64x128xf32> to vector<64x128xbf16>
    %c3_87 = arith.constant 3 : index
    %c0_88 = arith.constant 0 : index
    %c0_89 = arith.constant 0 : index
    %97 = vector.load %arg8[%c3_87, %c0_88, %c0_89] : memref<14x14x128xf32, #tpu.memory_space<vmem>>, vector<8x8x128xf32>
    %98 = vector.shape_cast %97 : vector<8x8x128xf32> to vector<64x128xf32>
    %99 = arith.truncf %98 : vector<64x128xf32> to vector<64x128xbf16>
    %c3_90 = arith.constant 3 : index
    %c3_91 = arith.constant 3 : index
    %c0_92 = arith.constant 0 : index
    %100 = vector.load %arg8[%c3_90, %c3_91, %c0_92] : memref<14x14x128xf32, #tpu.memory_space<vmem>>, vector<8x8x128xf32>
    %101 = vector.shape_cast %100 : vector<8x8x128xf32> to vector<64x128xf32>
    %102 = arith.truncf %101 : vector<64x128xf32> to vector<64x128xbf16>
    %c3_93 = arith.constant 3 : index
    %c6_94 = arith.constant 6 : index
    %c0_95 = arith.constant 0 : index
    %103 = vector.load %arg8[%c3_93, %c6_94, %c0_95] : memref<14x14x128xf32, #tpu.memory_space<vmem>>, vector<8x8x128xf32>
    %104 = vector.shape_cast %103 : vector<8x8x128xf32> to vector<64x128xf32>
    %105 = arith.truncf %104 : vector<64x128xf32> to vector<64x128xbf16>
    %c6_96 = arith.constant 6 : index
    %c0_97 = arith.constant 0 : index
    %c0_98 = arith.constant 0 : index
    %106 = vector.load %arg8[%c6_96, %c0_97, %c0_98] : memref<14x14x128xf32, #tpu.memory_space<vmem>>, vector<8x8x128xf32>
    %107 = vector.shape_cast %106 : vector<8x8x128xf32> to vector<64x128xf32>
    %108 = arith.truncf %107 : vector<64x128xf32> to vector<64x128xbf16>
    %c6_99 = arith.constant 6 : index
    %c3_100 = arith.constant 3 : index
    %c0_101 = arith.constant 0 : index
    %109 = vector.load %arg8[%c6_99, %c3_100, %c0_101] : memref<14x14x128xf32, #tpu.memory_space<vmem>>, vector<8x8x128xf32>
    %110 = vector.shape_cast %109 : vector<8x8x128xf32> to vector<64x128xf32>
    %111 = arith.truncf %110 : vector<64x128xf32> to vector<64x128xbf16>
    %c6_102 = arith.constant 6 : index
    %c6_103 = arith.constant 6 : index
    %c0_104 = arith.constant 0 : index
    %112 = vector.load %arg8[%c6_102, %c6_103, %c0_104] : memref<14x14x128xf32, #tpu.memory_space<vmem>>, vector<8x8x128xf32>
    %113 = vector.shape_cast %112 : vector<8x8x128xf32> to vector<64x128xf32>
    %114 = arith.truncf %113 : vector<64x128xf32> to vector<64x128xbf16>
    %115 = tpu.concatenate %90, %93, %96, %99, %102, %105, %108, %111, %114 in 1 : vector<64x128xbf16>, vector<64x128xbf16>, vector<64x128xbf16>, vector<64x128xbf16>, vector<64x128xbf16>, vector<64x128xbf16>, vector<64x128xbf16>, vector<64x128xbf16>, vector<64x128xbf16> -> vector<64x1152xbf16>
    %c0_105 = arith.constant 0 : index
    %c0_106 = arith.constant 0 : index
    %116 = vector.load %arg3[%c0_105, %c0_106] : memref<1152x64xbf16, #tpu.memory_space<vmem>>, vector<1152x64xbf16>
    %cst_107 = arith.constant dense<0.000000e+00> : vector<64x64xf32>
    %117 = tpu.matmul %115, %116, %cst_107 {dimension_numbers = #tpu.dot_dimension_numbers<[1], [0], [0], [1], [0, 0, 1, 1], [], []>} : vector<64x1152xbf16>, vector<1152x64xbf16>, vector<64x64xf32> -> vector<64x64xf32>
    %cst_108 = arith.constant dense<0.000000e+00> : vector<64xf32>
    %118 = vector.multi_reduction <add>, %117, %cst_108 [0] : vector<64x64xf32> to vector<64xf32>
    %119 = vector.shape_cast %118 : vector<64xf32> to vector<1x64xf32>
    %120 = arith.mulf %117, %117 : vector<64x64xf32>
    %cst_109 = arith.constant dense<0.000000e+00> : vector<64xf32>
    %121 = vector.multi_reduction <add>, %120, %cst_109 [0] : vector<64x64xf32> to vector<64xf32>
    %122 = vector.shape_cast %121 : vector<64xf32> to vector<1x64xf32>
    %123 = tpu.concatenate %119, %122 in 0 : vector<1x64xf32>, vector<1x64xf32> -> vector<2x64xf32>
    %c0_110 = arith.constant 0 : index
    %c0_111 = arith.constant 0 : index
    %124 = vector.load %arg5[%c0_110, %c0_111] : memref<64x64xf32, #tpu.memory_space<vmem>>, vector<64x64xf32>
    %cst_112 = arith.constant dense<0.000000e+00> : vector<2x64xf32>
    %125 = tpu.matmul %123, %124, %cst_112 {dimension_numbers = #tpu.dot_dimension_numbers<[1], [0], [0], [1], [0, 0, 1, 1], [], []>} : vector<2x64xf32>, vector<64x64xf32>, vector<2x64xf32> -> vector<2x64xf32>
    %126 = vector.extract_strided_slice %125 {offsets = [0, 0], sizes = [1, 64], strides = [1, 1]} : vector<2x64xf32> to vector<1x64xf32>
    %cst_113 = arith.constant 0.001953125 : f32
    %127 = vector.broadcast %cst_113 : f32 to vector<1x64xf32>
    %128 = arith.mulf %126, %127 : vector<1x64xf32>
    %129 = vector.extract_strided_slice %125 {offsets = [1, 0], sizes = [1, 64], strides = [1, 1]} : vector<2x64xf32> to vector<1x64xf32>
    %cst_114 = arith.constant 0.001953125 : f32
    %130 = vector.broadcast %cst_114 : f32 to vector<1x64xf32>
    %131 = arith.mulf %129, %130 : vector<1x64xf32>
    %132 = arith.mulf %128, %128 : vector<1x64xf32>
    %133 = arith.subf %131, %132 : vector<1x64xf32>
    %cst_115 = arith.constant 0.000000e+00 : f32
    %134 = vector.broadcast %cst_115 : f32 to vector<1x64xf32>
    %135 = arith.maximumf %133, %134 : vector<1x64xf32>
    %cst_116 = arith.constant 9.99999974E-6 : f32
    %136 = vector.broadcast %cst_116 : f32 to vector<1x64xf32>
    %137 = arith.addf %135, %136 : vector<1x64xf32>
    %138 = math.rsqrt %137 : vector<1x64xf32>
    %139 = vector.broadcast %128 : vector<1x64xf32> to vector<64x64xf32>
    %140 = arith.subf %117, %139 : vector<64x64xf32>
    %141 = vector.broadcast %138 : vector<1x64xf32> to vector<64x64xf32>
    %142 = arith.mulf %140, %141 : vector<64x64xf32>
    %143 = arith.addf %142, %53 : vector<64x64xf32>
    %cst_117 = arith.constant 0.000000e+00 : f32
    %144 = vector.broadcast %cst_117 : f32 to vector<64x64xf32>
    %145 = arith.cmpf oge, %143, %144 : vector<64x64xf32>
    %cst_118 = arith.constant 0.000000e+00 : f32
    %146 = vector.broadcast %cst_118 : f32 to vector<64x64xf32>
    %147 = arith.mulf %146, %143 : vector<64x64xf32>
    %148 = arith.select %145, %143, %147 : vector<64x64xi1>, vector<64x64xf32>
    %c0_119 = arith.constant 0 : index
    %c0_120 = arith.constant 0 : index
    %c0_121 = arith.constant 0 : index
    %149 = vector.load %arg6[%c0_119, %c0_120, %c0_121] : memref<1x64x64xf32, #tpu.memory_space<vmem>>, vector<1x64x64xf32>
    %150 = vector.shape_cast %149 : vector<1x64x64xf32> to vector<64x64xf32>
    %151 = vector.shape_cast %148 : vector<64x64xf32> to vector<1x64x64xf32>
    tpu.vector_store %arg6[%c0_119, %c0_120, %c0_121], %151 {strides = array<i32>} : memref<1x64x64xf32, #tpu.memory_space<vmem>>, vector<1x64x64xf32>,
    return
  }
  func.func @transform_0(%arg0: i32) -> (i32, i32, i32, i32) {
    %c0_i32 = arith.constant 0 : i32
    %c0_i32_0 = arith.constant 0 : i32
    %c0_i32_1 = arith.constant 0 : i32
    %c0_i32_2 = arith.constant 0 : i32
    return %arg0, %c0_i32, %c0_i32_0, %c0_i32_1 : i32, i32, i32, i32
  }
  func.func @transform_1(%arg0: i32) -> (i32, i32) {
    %c0_i32 = arith.constant 0 : i32
    %c0_i32_0 = arith.constant 0 : i32
    %c0_i32_1 = arith.constant 0 : i32
    return %c0_i32, %c0_i32_0 : i32, i32
  }
  func.func @transform_2(%arg0: i32) -> (i32, i32) {
    %c0_i32 = arith.constant 0 : i32
    %c0_i32_0 = arith.constant 0 : i32
    %c0_i32_1 = arith.constant 0 : i32
    return %c0_i32, %c0_i32_0 : i32, i32
  }
  func.func @transform_3(%arg0: i32) -> (i32, i32) {
    %c0_i32 = arith.constant 0 : i32
    %c0_i32_0 = arith.constant 0 : i32
    %c0_i32_1 = arith.constant 0 : i32
    return %c0_i32, %c0_i32_0 : i32, i32
  }
  func.func @transform_4(%arg0: i32) -> (i32, i32) {
    %c0_i32 = arith.constant 0 : i32
    %c0_i32_0 = arith.constant 0 : i32
    %c0_i32_1 = arith.constant 0 : i32
    return %c0_i32, %c0_i32_0 : i32, i32
  }
  func.func @transform_5(%arg0: i32) -> (i32, i32, i32) {
    %c0_i32 = arith.constant 0 : i32
    %c0_i32_0 = arith.constant 0 : i32
    %c0_i32_1 = arith.constant 0 : i32
    return %arg0, %c0_i32, %c0_i32_0 : i32, i32, i32
  }
}

</mosaic_0001>

<llo_original>
// kernel: atrous_ii_block.1
$region0: #{atrous_ii_block.1}
  #allocation0 [shape = 'u32[]', space=smem, size = 0x4, offset = 0x4, fixed_abs, tag = 'smem constant byte address 0x4 - core index']
  #allocation1 [shape = 'u32[144,128]{1,0:T(1,128)}', space=vmem, size = 0x12000, scoped, tag = 'internal scratch']
  #allocation2 [shape = 'f32[10,10,128]{2,1,0:T(8,128)}', space=vmem, size = 0x14000, scoped, tag = 'scratch operand']
  #allocation3 [shape = 'f32[14,14,128]{2,1,0:T(8,128)}', space=vmem, size = 0x1c000, scoped, tag = 'scratch operand']
  %s0 = inlined_call_operand.vmem [shape: f32[2,8,8,128], index: 0, kind: input, shape index: {}]
  %s1 = inlined_call_operand.vmem [shape: bf16[1152,128], index: 1, kind: input, shape index: {}]
  %s2 = inlined_call_operand.vmem [shape: bf16[1152,64], index: 2, kind: input, shape index: {}]
  %s3 = inlined_call_operand.vmem [shape: f32[1,64], index: 3, kind: input, shape index: {}]
  %s4 = inlined_call_operand.vmem [shape: f32[64,64], index: 4, kind: input, shape index: {}]
  %s5 = inlined_call_operand.vmem [shape: f32[2,64,64], index: 5, kind: output, shape index: {}]
  %s6 = sld [smem:[#allocation0]]
  $region53: #{atrous_ii_block.1} parent=0
    _
  %s8 = ssub.s32 1, %s6
  %s9 = scalar_select 0, %s8, %s6
  loop: start=0, step=1, limit=4
  $region2: #{atrous_ii_block.1} parent=0 // loop_pre_header
    _
  $region3: #{atrous_ii_block.1} parent=0 // loop_header
    %s11 = sphi 0, %s15
    %p12 = scmp.ge.s32.totalorder %s11, 4
    %s21 = sphi 0, %s23
    %s24 = sphi 0, %s21
    %s25 = sphi 0, %s24
    %s41 = sphi 0, %s25
    %s45 = sphi 0, %s45
    %s47 = sphi 0, %s45
    %s48 = sphi 0, %s47
    %s62 = sphi 0, %s48
    %s66 = sphi 0, %s66
    %s68 = sphi 0, %s66
    %s69 = sphi 0, %s68
    %s83 = sphi 0, %s69
    %s87 = sphi 0, %s87
    %s89 = sphi 0, %s87
    %s90 = sphi 0, %s89
    %s104 = sphi 0, %s90
    %s108 = sphi 0, %s108
    %s110 = sphi 0, %s108
    %s111 = sphi 0, %s110
    %s125 = sphi 0, %s111
    %s131 = sphi 0, %s133
    %s134 = sphi 0, %s131
    %s135 = sphi 0, %s134
    %s151 = sphi 0, %s135
  $region4: #{atrous_ii_block.1} parent=0 // loop_header_branch
    %14 = sbr.rel (%p12) target = $region8
  $region5: #{atrous_ii_block.1} parent=0 // loop_body
    %s16 = ssub.s32 %s11, 1
    %s17 = ssub.s32 %s11, 2
    %s18 = sadd.s32 %s11, 1
    %s19 = ssub.s32 %s11, %s18
    %p20 = scmp.eq.s32.totalorder %s19, 0
    %s22 = sadd.s32 %s21, 1
    %s23 = scalar_select %p20, %s21, %s22
    %p26 = pneg %p20
    %p27 = scmp.eq.s32.totalorder %s11, 1
    %p28 = por %p26, %p27
    %p29 = scmp.ne.s32.totalorder %s21, %s24
    %p30 = scmp.eq.s32.totalorder %s11, 0
    %p31 = por %p29, %p30
    %p32 = scmp.ne.s32.totalorder %s21, %s24
    %p33 = scmp.eq.s32.totalorder %s16, 1
    %p34 = por %p32, %p33
    %p35 = scmp.ne.s32.totalorder %s24, %s25
    %p36 = scmp.eq.s32.totalorder %s16, 0
    %p37 = por %p35, %p36
    %p38 = scmp.ne.s32.totalorder %s24, %s25
    %p39 = scmp.eq.s32.totalorder %s17, 1
    %p40 = por %p38, %p39
    %p42 = scmp.ne.s32.totalorder %s25, %s41
    %p43 = scmp.eq.s32.totalorder %s17, 0
    %p44 = por %p42, %p43
    %s46 = sadd.s32 %s45, 1
    %p49 = scmp.eq.s32.totalorder %s11, 1
    %p50 = scmp.ne.s32.totalorder %s45, %s47
    %p51 = scmp.eq.s32.totalorder %s11, 0
    %p52 = por %p50, %p51
    %p53 = scmp.ne.s32.totalorder %s45, %s47
    %p54 = scmp.eq.s32.totalorder %s16, 1
    %p55 = por %p53, %p54
    %p56 = scmp.ne.s32.totalorder %s47, %s48
    %p57 = scmp.eq.s32.totalorder %s16, 0
    %p58 = por %p56, %p57
    %p59 = scmp.ne.s32.totalorder %s47, %s48
    %p60 = scmp.eq.s32.totalorder %s17, 1
    %p61 = por %p59, %p60
    %p63 = scmp.ne.s32.totalorder %s48, %s62
    %p64 = scmp.eq.s32.totalorder %s17, 0
    %p65 = por %p63, %p64
    %s67 = sadd.s32 %s66, 1
    %p70 = scmp.eq.s32.totalorder %s11, 1
    %p71 = scmp.ne.s32.totalorder %s66, %s68
    %p72 = scmp.eq.s32.totalorder %s11, 0
    %p73 = por %p71, %p72
    %p74 = scmp.ne.s32.totalorder %s66, %s68
    %p75 = scmp.eq.s32.totalorder %s16, 1
    %p76 = por %p74, %p75
    %p77 = scmp.ne.s32.totalorder %s68, %s69
    %p78 = scmp.eq.s32.totalorder %s16, 0
    %p79 = por %p77, %p78
    %p80 = scmp.ne.s32.totalorder %s68, %s69
    %p81 = scmp.eq.s32.totalorder %s17, 1
    %p82 = por %p80, %p81
    %p84 = scmp.ne.s32.totalorder %s69, %s83
    %p85 = scmp.eq.s32.totalorder %s17, 0
    %p86 = por %p84, %p85
    %s88 = sadd.s32 %s87, 1
    %p91 = scmp.eq.s32.totalorder %s11, 1
    %p92 = scmp.ne.s32.totalorder %s87, %s89
    %p93 = scmp.eq.s32.totalorder %s11, 0
    %p94 = por %p92, %p93
    %p95 = scmp.ne.s32.totalorder %s87, %s89
    %p96 = scmp.eq.s32.totalorder %s16, 1
    %p97 = por %p95, %p96
    %p98 = scmp.ne.s32.totalorder %s89, %s90
    %p99 = scmp.eq.s32.totalorder %s16, 0
    %p100 = por %p98, %p99
    %p101 = scmp.ne.s32.totalorder %s89, %s90
    %p102 = scmp.eq.s32.totalorder %s17, 1
    %p103 = por %p101, %p102
    %p105 = scmp.ne.s32.totalorder %s90, %s104
    %p106 = scmp.eq.s32.totalorder %s17, 0
    %p107 = por %p105, %p106
    %s109 = sadd.s32 %s108, 1
    %p112 = scmp.eq.s32.totalorder %s11, 1
    %p113 = scmp.ne.s32.totalorder %s108, %s110
    %p114 = scmp.eq.s32.totalorder %s11, 0
    %p115 = por %p113, %p114
    %p116 = scmp.ne.s32.totalorder %s108, %s110
    %p117 = scmp.eq.s32.totalorder %s16, 1
    %p118 = por %p116, %p117
    %p119 = scmp.ne.s32.totalorder %s110, %s111
    %p120 = scmp.eq.s32.totalorder %s16, 0
    %p121 = por %p119, %p120
    %p122 = scmp.ne.s32.totalorder %s110, %s111
    %p123 = scmp.eq.s32.totalorder %s17, 1
    %p124 = por %p122, %p123
    %p126 = scmp.ne.s32.totalorder %s111, %s125
    %p127 = scmp.eq.s32.totalorder %s17, 0
    %p128 = por %p126, %p127
    %s129 = ssub.s32 %s11, %s18
    %p130 = scmp.eq.s32.totalorder %s129, 0
    %s132 = sadd.s32 %s131, 1
    %s133 = scalar_select %p130, %s131, %s132
    %p136 = pneg %p130
    %p137 = scmp.eq.s32.totalorder %s11, 1
    %p138 = por %p136, %p137
    %p139 = scmp.ne.s32.totalorder %s131, %s134
    %p140 = scmp.eq.s32.totalorder %s11, 0
    %p141 = por %p139, %p140
    %p142 = scmp.ne.s32.totalorder %s131, %s134
    %p143 = scmp.eq.s32.totalorder %s16, 1
    %p144 = por %p142, %p143
    %p145 = scmp.ne.s32.totalorder %s134, %s135
    %p146 = scmp.eq.s32.totalorder %s16, 0
    %p147 = por %p145, %p146
    %p148 = scmp.ne.s32.totalorder %s134, %s135
    %p149 = scmp.eq.s32.totalorder %s17, 1
    %p150 = por %p148, %p149
    %p152 = scmp.ne.s32.totalorder %s135, %s151
    %p153 = scmp.eq.s32.totalorder %s17, 0
    %p154 = por %p152, %p153
    %p155 = scmp.le.s32.totalorder 1, %s11
    %p156 = scmp.lt.s32.totalorder %s11, 3
    %p157 = pnand %p155, %p156
    %p158 = pneg %p157
    // Predicated region
    $region9: #{atrous_ii_block.1} parent=5 // pred_check
      _
    $region10: #{atrous_ii_block.1} parent=5 // pred_check_branch
      %160 = sbr.rel (%p157) target = $region12
    $region11: #{atrous_ii_block.1} parent=5 // pred_region
      %s161 = ssub.s32 %s11, 1
      // Predicated region
      $region13: #{atrous_ii_block.1} parent=11 // pred_check
        %p162 = pneg %p58
      $region14: #{atrous_ii_block.1} parent=11 // pred_check_branch
        %164 = sbr.rel (%p162) target = $region16
      $region15: #{atrous_ii_block.1} parent=11 // pred_region
        _
      $region16: #{atrous_ii_block.1} parent=11 // pred_fallthru
        _
      // Predicated region
      $region17: #{atrous_ii_block.1} parent=11 // pred_check
        %p165 = pneg %p79
      $region18: #{atrous_ii_block.1} parent=11 // pred_check_branch
        %167 = sbr.rel (%p165) target = $region20
      $region19: #{atrous_ii_block.1} parent=11 // pred_region
        _
      $region20: #{atrous_ii_block.1} parent=11 // pred_fallthru
        _
      // Predicated region
      $region21: #{atrous_ii_block.1} parent=11 // pred_check
        %p168 = pneg %p100
      $region22: #{atrous_ii_block.1} parent=11 // pred_check_branch
        %170 = sbr.rel (%p168) target = $region24
      $region23: #{atrous_ii_block.1} parent=11 // pred_region
        _
      $region24: #{atrous_ii_block.1} parent=11 // pred_fallthru
        _
      // Predicated region
      $region25: #{atrous_ii_block.1} parent=11 // pred_check
        %p171 = pneg %p121
      $region26: #{atrous_ii_block.1} parent=11 // pred_check_branch
        %173 = sbr.rel (%p171) target = $region28
      $region27: #{atrous_ii_block.1} parent=11 // pred_region
        _
      $region28: #{atrous_ii_block.1} parent=11 // pred_fallthru
        _
    $region12: #{atrous_ii_block.1} parent=5 // pred_fallthru
      _
    %p174 = scmp.lt.s32.totalorder %s11, 2
    // Predicated region
    $region29: #{atrous_ii_block.1} parent=5 // pred_check
      %p175 = pneg %p174
    $region30: #{atrous_ii_block.1} parent=5 // pred_check_branch
      %177 = sbr.rel (%p175) target = $region32
    $region31: #{atrous_ii_block.1} parent=5 // pred_region
      // Predicated region
      $region33: #{atrous_ii_block.1} parent=31 // pred_check
        %p178 = pneg %p31
      $region34: #{atrous_ii_block.1} parent=31 // pred_check_branch
        %180 = sbr.rel (%p178) target = $region36
      $region35: #{atrous_ii_block.1} parent=31 // pred_region
        %p181 = scmp.lt.s32.totalorder %s11, 1
        %s182 = scalar_select %p181, %s11, 1
        %s183 = smul.addr %s182, 8
        %s184 = smul.addr %s183, 8
        %s185 = scalar_lea.vmem %s0, %s184
      $region36: #{atrous_ii_block.1} parent=31 // pred_fallthru
        _
    $region32: #{atrous_ii_block.1} parent=5 // pred_fallthru
      _
    %p186 = scmp.le.s32.totalorder 1, %s11
    %p187 = scmp.lt.s32.totalorder %s11, 3
    %p188 = pnand %p186, %p187
    %p189 = pneg %p188
    // Predicated region
    $region37: #{atrous_ii_block.1} parent=5 // pred_check
      _
    $region38: #{atrous_ii_block.1} parent=5 // pred_check_branch
      %191 = sbr.rel (%p188) target = $region40
    $region39: #{atrous_ii_block.1} parent=5 // pred_region
      %s192 = ssub.s32 %s11, 1
      %p193 = scmp.lt.s32.totalorder %s16, 1
      %s194 = scalar_select %p193, %s16, 1
      %s195 = smul.addr %s194, 8
      %s196 = smul.addr %s195, 8
      %s197 = scalar_lea.vmem %s0, %s196
      %p198 = pneg %p37
      %p199 = pneg %p34
      %p200 = pneg %p58
      %p201 = pneg %p55
      %p202 = pneg %p79
      %p203 = pneg %p76
      %p204 = pneg %p100
      %p205 = pneg %p97
      %p206 = pneg %p121
      %p207 = pneg %p118
      %p208 = pneg %p147
      %p209 = pneg %p144
      %p210 = scmp.lt.s32.totalorder %s16, 1
      %s211 = scalar_select %p210, %s16, 1
      %s212 = smul.addr %s211, 8
      %s213 = smul.addr %s212, 8
      %s214 = scalar_lea.vmem %s5, %s213
      %p215 = scmp.lt.s32.totalorder %s16, 1
      %s216 = scalar_select %p215, %s16, 1
      %s217 = smul.addr %s216, 8
      %s218 = smul.addr %s217, 8
      %s219 = scalar_lea.vmem %s0, %s218
      %p220 = scmp.lt.s32.totalorder %s16, 1
      %s221 = scalar_select %p220, %s16, 1
      %s222 = smul.addr %s221, 8
      %s223 = smul.addr %s222, 8
      %s224 = scalar_lea.vmem %s5, %s223
      %226 = vst [vmem:[#allocation2] sm:$0xff] 0.0
      %227 = vst [vmem:[#allocation2 + $0x8] sm:$0x3] 0.0
      %s228 = scalar_lea.vmem [#allocation2], 144
      %229 = vst [vmem:[%s228] sm:$0xff] 0.0
      %230 = vst [vmem:[%s228 + $0x8] sm:$0x3] 0.0
      %s231 = scalar_lea.vmem [#allocation2], 16
      %232 = vst [vmem:[%s231] sm:$0x1] 0.0
      %233 = vst [vmem:[%s231 + $0x10] sm:$0x1] 0.0
      %234 = vst [vmem:[%s231 + $0x20] sm:$0x1] 0.0
      %235 = vst [vmem:[%s231 + $0x30] sm:$0x1] 0.0
      %236 = vst [vmem:[%s231 + $0x40] sm:$0x1] 0.0
      %237 = vst [vmem:[%s231 + $0x50] sm:$0x1] 0.0
      %238 = vst [vmem:[%s231 + $0x60] sm:$0x1] 0.0
      %239 = vst [vmem:[%s231 + $0x70] sm:$0x1] 0.0
      %240 = vst [vmem:[%s231 + $0x9] sm:$0x1] 0.0
      %241 = vst [vmem:[%s231 + $0x19] sm:$0x1] 0.0
      %242 = vst [vmem:[%s231 + $0x29] sm:$0x1] 0.0
      %243 = vst [vmem:[%s231 + $0x39] sm:$0x1] 0.0
      %244 = vst [vmem:[%s231 + $0x49] sm:$0x1] 0.0
      %245 = vst [vmem:[%s231 + $0x59] sm:$0x1] 0.0
      %246 = vst [vmem:[%s231 + $0x69] sm:$0x1] 0.0
      %247 = vst [vmem:[%s231 + $0x79] sm:$0x1] 0.0
      %248 = vst [vmem:[#allocation3] sm:$0xff] 0.0
      %249 = vst [vmem:[#allocation3 + $0x8] sm:$0x3f] 0.0
      %250 = vst [vmem:[#allocation3 + $0x10] sm:$0xff] 0.0
      %251 = vst [vmem:[#allocation3 + $0x18] sm:$0x3f] 0.0
      %252 = vst [vmem:[#allocation3 + $0x20] sm:$0xff] 0.0
      %253 = vst [vmem:[#allocation3 + $0x28] sm:$0x3f] 0.0
      %s254 = scalar_lea.vmem [#allocation3], 176
      %255 = vst [vmem:[%s254] sm:$0xff] 0.0
      %256 = vst [vmem:[%s254 + $0x8] sm:$0x3f] 0.0
      %257 = vst [vmem:[%s254 + $0x10] sm:$0xff] 0.0
      %258 = vst [vmem:[%s254 + $0x18] sm:$0x3f] 0.0
      %259 = vst [vmem:[%s254 + $0x20] sm:$0xff] 0.0
      %260 = vst [vmem:[%s254 + $0x28] sm:$0x3f] 0.0
      %s261 = scalar_lea.vmem [#allocation3], 48
      %262 = vst [vmem:[%s261] sm:$0x7] 0.0
      %263 = vst [vmem:[%s261 + $0x10] sm:$0x7] 0.0
      %264 = vst [vmem:[%s261 + $0x20] sm:$0x7] 0.0
      %265 = vst [vmem:[%s261 + $0x30] sm:$0x7] 0.0
      %266 = vst [vmem:[%s261 + $0x40] sm:$0x7] 0.0
      %267 = vst [vmem:[%s261 + $0x50] sm:$0x7] 0.0
      %268 = vst [vmem:[%s261 + $0x60] sm:$0x7] 0.0
      %269 = vst [vmem:[%s261 + $0x70] sm:$0x7] 0.0
      %270 = vst [vmem:[%s261 + $0xb] sm:$0x7] 0.0
      %271 = vst [vmem:[%s261 + $0x1b] sm:$0x7] 0.0
      %272 = vst [vmem:[%s261 + $0x2b] sm:$0x7] 0.0
      %273 = vst [vmem:[%s261 + $0x3b] sm:$0x7] 0.0
      %274 = vst [vmem:[%s261 + $0x4b] sm:$0x7] 0.0
      %275 = vst [vmem:[%s261 + $0x5b] sm:$0x7] 0.0
      %276 = vst [vmem:[%s261 + $0x6b] sm:$0x7] 0.0
      %277 = vst [vmem:[%s261 + $0x7b] sm:$0x7] 0.0
      %v278 = vld [vmem:[%s219] sm:$0xff]
      %v279 = vld [vmem:[%s219 + $0x8] sm:$0xff]
      %v280 = vld [vmem:[%s219 + $0x10] sm:$0xff]
      %v281 = vld [vmem:[%s219 + $0x18] sm:$0xff]
      %v282 = vld [vmem:[%s219 + $0x20] sm:$0xff]
      %v283 = vld [vmem:[%s219 + $0x28] sm:$0xff]
      %v284 = vld [vmem:[%s219 + $0x30] sm:$0xff]
      %v285 = vld [vmem:[%s219 + $0x38] sm:$0xff]
      %286 = vst [vmem:[%s231 + $0x1] sm:$0xff] %v278
      %287 = vst [vmem:[%s231 + $0x11] sm:$0xff] %v279
      %288 = vst [vmem:[%s231 + $0x21] sm:$0xff] %v280
      %289 = vst [vmem:[%s231 + $0x31] sm:$0xff] %v281
      %290 = vst [vmem:[%s231 + $0x41] sm:$0xff] %v282
      %291 = vst [vmem:[%s231 + $0x51] sm:$0xff] %v283
      %292 = vst [vmem:[%s231 + $0x61] sm:$0xff] %v284
      %293 = vst [vmem:[%s231 + $0x71] sm:$0xff] %v285
      %v294 = vld [vmem:[#allocation2] sm:$0xff]
      %v295 = vld [vmem:[#allocation2 + $0x10] sm:$0xff]
      %v296 = vld [vmem:[#allocation2 + $0x20] sm:$0xff]
      %v297 = vld [vmem:[#allocation2 + $0x30] sm:$0xff]
      %v298 = vld [vmem:[#allocation2 + $0x40] sm:$0xff]
      %v299 = vld [vmem:[#allocation2 + $0x50] sm:$0xff]
      %v300 = vld [vmem:[#allocation2 + $0x60] sm:$0xff]
      %v301 = vld [vmem:[#allocation2 + $0x70] sm:$0xff]
      %v302 = vpack.c.bf16 %v295, %v294
      %v303 = vpack.c.bf16 %v297, %v296
      %v304 = vpack.c.bf16 %v299, %v298
      %v305 = vpack.c.bf16 %v301, %v300
      %v306 = vld [vmem:[#allocation2 + $0x1] sm:$0xff]
      %v307 = vld [vmem:[#allocation2 + $0x11] sm:$0xff]
      %v308 = vld [vmem:[#allocation2 + $0x21] sm:$0xff]
      %v309 = vld [vmem:[#allocation2 + $0x31] sm:$0xff]
      %v310 = vld [vmem:[#allocation2 + $0x41] sm:$0xff]
      %v311 = vld [vmem:[#allocation2 + $0x51] sm:$0xff]
      %v312 = vld [vmem:[#allocation2 + $0x61] sm:$0xff]
      %v313 = vld [vmem:[#allocation2 + $0x71] sm:$0xff]
      %v314 = vpack.c.bf16 %v307, %v306
      %v315 = vpack.c.bf16 %v309, %v308
      %v316 = vpack.c.bf16 %v311, %v310
      %v317 = vpack.c.bf16 %v313, %v312
      %v318 = vld [vmem:[#allocation2 + $0x2] sm:$0xff]
      %v319 = vld [vmem:[#allocation2 + $0x12] sm:$0xff]
      %v320 = vld [vmem:[#allocation2 + $0x22] sm:$0xff]
      %v321 = vld [vmem:[#allocation2 + $0x32] sm:$0xff]
      %v322 = vld [vmem:[#allocation2 + $0x42] sm:$0xff]
      %v323 = vld [vmem:[#allocation2 + $0x52] sm:$0xff]
      %v324 = vld [vmem:[#allocation2 + $0x62] sm:$0xff]
      %v325 = vld [vmem:[#allocation2 + $0x72] sm:$0xff]
      %v326 = vpack.c.bf16 %v319, %v318
      %v327 = vpack.c.bf16 %v321, %v320
      %v328 = vpack.c.bf16 %v323, %v322
      %v329 = vpack.c.bf16 %v325, %v324
      %v330 = vld [vmem:[%s231] sm:$0xff]
      %v331 = vld [vmem:[%s231 + $0x10] sm:$0xff]
      %v332 = vld [vmem:[%s231 + $0x20] sm:$0xff]
      %v333 = vld [vmem:[%s231 + $0x30] sm:$0xff]
      %v334 = vld [vmem:[%s231 + $0x40] sm:$0xff]
      %v335 = vld [vmem:[%s231 + $0x50] sm:$0xff]
      %v336 = vld [vmem:[%s231 + $0x60] sm:$0xff]
      %v337 = vld [vmem:[%s231 + $0x70] sm:$0xff]
      %v338 = vpack.c.bf16 %v331, %v330
      %v339 = vpack.c.bf16 %v333, %v332
      %v340 = vpack.c.bf16 %v335, %v334
      %v341 = vpack.c.bf16 %v337, %v336
      %v342 = vld [vmem:[%s231 + $0x1] sm:$0xff]
      %v343 = vld [vmem:[%s231 + $0x11] sm:$0xff]
      %v344 = vld [vmem:[%s231 + $0x21] sm:$0xff]
      %v345 = vld [vmem:[%s231 + $0x31] sm:$0xff]
      %v346 = vld [vmem:[%s231 + $0x41] sm:$0xff]
      %v347 = vld [vmem:[%s231 + $0x51] sm:$0xff]
      %v348 = vld [vmem:[%s231 + $0x61] sm:$0xff]
      %v349 = vld [vmem:[%s231 + $0x71] sm:$0xff]
      %v350 = vpack.c.bf16 %v343, %v342
      %v351 = vpack.c.bf16 %v345, %v344
      %v352 = vpack.c.bf16 %v347, %v346
      %v353 = vpack.c.bf16 %v349, %v348
      %v354 = vld [vmem:[%s231 + $0x2] sm:$0xff]
      %v355 = vld [vmem:[%s231 + $0x12] sm:$0xff]
      %v356 = vld [vmem:[%s231 + $0x22] sm:$0xff]
      %v357 = vld [vmem:[%s231 + $0x32] sm:$0xff]
      %v358 = vld [vmem:[%s231 + $0x42] sm:$0xff]
      %v359 = vld [vmem:[%s231 + $0x52] sm:$0xff]
      %v360 = vld [vmem:[%s231 + $0x62] sm:$0xff]
      %v361 = vld [vmem:[%s231 + $0x72] sm:$0xff]
      %v362 = vpack.c.bf16 %v355, %v354
      %v363 = vpack.c.bf16 %v357, %v356
      %v364 = vpack.c.bf16 %v359, %v358
      %v365 = vpack.c.bf16 %v361, %v360
      %s366 = scalar_lea.vmem [#allocation2], 32
      %v367 = vld [vmem:[%s366] sm:$0xff]
      %v368 = vld [vmem:[%s366 + $0x10] sm:$0xff]
      %v369 = vld [vmem:[%s366 + $0x20] sm:$0xff]
      %v370 = vld [vmem:[%s366 + $0x30] sm:$0xff]
      %v371 = vld [vmem:[%s366 + $0x40] sm:$0xff]
      %v372 = vld [vmem:[%s366 + $0x50] sm:$0xff]
      %v373 = vld [vmem:[%s366 + $0x60] sm:$0xff]
      %v374 = vld [vmem:[%s366 + $0x70] sm:$0xff]
      %v375 = vpack.c.bf16 %v368, %v367
      %v376 = vpack.c.bf16 %v370, %v369
      %v377 = vpack.c.bf16 %v372, %v371
      %v378 = vpack.c.bf16 %v374, %v373
      %v379 = vld [vmem:[%s366 + $0x1] sm:$0xff]
      %v380 = vld [vmem:[%s366 + $0x11] sm:$0xff]
      %v381 = vld [vmem:[%s366 + $0x21] sm:$0xff]
      %v382 = vld [vmem:[%s366 + $0x31] sm:$0xff]
      %v383 = vld [vmem:[%s366 + $0x41] sm:$0xff]
      %v384 = vld [vmem:[%s366 + $0x51] sm:$0xff]
      %v385 = vld [vmem:[%s366 + $0x61] sm:$0xff]
      %v386 = vld [vmem:[%s366 + $0x71] sm:$0xff]
      %v387 = vpack.c.bf16 %v380, %v379
      %v388 = vpack.c.bf16 %v382, %v381
      %v389 = vpack.c.bf16 %v384, %v383
      %v390 = vpack.c.bf16 %v386, %v385
      %v391 = vld [vmem:[%s366 + $0x2] sm:$0xff]
      %v392 = vld [vmem:[%s366 + $0x12] sm:$0xff]
      %v393 = vld [vmem:[%s366 + $0x22] sm:$0xff]
      %v394 = vld [vmem:[%s366 + $0x32] sm:$0xff]
      %v395 = vld [vmem:[%s366 + $0x42] sm:$0xff]
      %v396 = vld [vmem:[%s366 + $0x52] sm:$0xff]
      %v397 = vld [vmem:[%s366 + $0x62] sm:$0xff]
      %v398 = vld [vmem:[%s366 + $0x72] sm:$0xff]
      %v399 = vpack.c.bf16 %v392, %v391
      %v400 = vpack.c.bf16 %v394, %v393
      %v401 = vpack.c.bf16 %v396, %v395
      %v402 = vpack.c.bf16 %v398, %v397
      %v403 = vld [vmem:[%s1] sm:$0xf]
      %v404 = vld [vmem:[%s1 + $0x4] sm:$0xf]
      %v405 = vld [vmem:[%s1 + $0x8] sm:$0xf]
      %v406 = vld [vmem:[%s1 + $0xc] sm:$0xf]
      %v407 = vld [vmem:[%s1 + $0x10] sm:$0xf]
      %v408 = vld [vmem:[%s1 + $0x14] sm:$0xf]
      %v409 = vld [vmem:[%s1 + $0x18] sm:$0xf]
      %v410 = vld [vmem:[%s1 + $0x1c] sm:$0xf]
      %v411 = vld [vmem:[%s1 + $0x20] sm:$0xf]
      %v412 = vld [vmem:[%s1 + $0x24] sm:$0xf]
      %v413 = vld [vmem:[%s1 + $0x28] sm:$0xf]
      %v414 = vld [vmem:[%s1 + $0x2c] sm:$0xf]
      %v415 = vld [vmem:[%s1 + $0x30] sm:$0xf]
      %v416 = vld [vmem:[%s1 + $0x34] sm:$0xf]
      %v417 = vld [vmem:[%s1 + $0x38] sm:$0xf]
      %v418 = vld [vmem:[%s1 + $0x3c] sm:$0xf]
      %v419 = vld [vmem:[%s1 + $0x40] sm:$0xf]
      %v420 = vld [vmem:[%s1 + $0x44] sm:$0xf]
      %v421 = vld [vmem:[%s1 + $0x48] sm:$0xf]
      %v422 = vld [vmem:[%s1 + $0x4c] sm:$0xf]
      %v423 = vld [vmem:[%s1 + $0x50] sm:$0xf]
      %v424 = vld [vmem:[%s1 + $0x54] sm:$0xf]
      %v425 = vld [vmem:[%s1 + $0x58] sm:$0xf]
      %v426 = vld [vmem:[%s1 + $0x5c] sm:$0xf]
      %v427 = vld [vmem:[%s1 + $0x60] sm:$0xf]
      %v428 = vld [vmem:[%s1 + $0x64] sm:$0xf]
      %v429 = vld [vmem:[%s1 + $0x68] sm:$0xf]
      %v430 = vld [vmem:[%s1 + $0x6c] sm:$0xf]
      %v431 = vld [vmem:[%s1 + $0x70] sm:$0xf]
      %v432 = vld [vmem:[%s1 + $0x74] sm:$0xf]
      %v433 = vld [vmem:[%s1 + $0x78] sm:$0xf]
      %v434 = vld [vmem:[%s1 + $0x7c] sm:$0xf]
      %v435 = vld [vmem:[%s1 + $0x80] sm:$0xf]
      %v436 = vld [vmem:[%s1 + $0x84] sm:$0xf]
      %v437 = vld [vmem:[%s1 + $0x88] sm:$0xf]
      %v438 = vld [vmem:[%s1 + $0x8c] sm:$0xf]
      %v439 = vld [vmem:[%s1 + $0x90] sm:$0xf]
      %v440 = vld [vmem:[%s1 + $0x94] sm:$0xf]
      %v441 = vld [vmem:[%s1 + $0x98] sm:$0xf]
      %v442 = vld [vmem:[%s1 + $0x9c] sm:$0xf]
      %v443 = vld [vmem:[%s1 + $0xa0] sm:$0xf]
      %v444 = vld [vmem:[%s1 + $0xa4] sm:$0xf]
      %v445 = vld [vmem:[%s1 + $0xa8] sm:$0xf]
      %v446 = vld [vmem:[%s1 + $0xac] sm:$0xf]
      %v447 = vld [vmem:[%s1 + $0xb0] sm:$0xf]
      %v448 = vld [vmem:[%s1 + $0xb4] sm:$0xf]
      %v449 = vld [vmem:[%s1 + $0xb8] sm:$0xf]
      %v450 = vld [vmem:[%s1 + $0xbc] sm:$0xf]
      %v451 = vld [vmem:[%s1 + $0xc0] sm:$0xf]
      %v452 = vld [vmem:[%s1 + $0xc4] sm:$0xf]
      %v453 = vld [vmem:[%s1 + $0xc8] sm:$0xf]
      %v454 = vld [vmem:[%s1 + $0xcc] sm:$0xf]
      %v455 = vld [vmem:[%s1 + $0xd0] sm:$0xf]
      %v456 = vld [vmem:[%s1 + $0xd4] sm:$0xf]
      %v457 = vld [vmem:[%s1 + $0xd8] sm:$0xf]
      %v458 = vld [vmem:[%s1 + $0xdc] sm:$0xf]
      %v459 = vld [vmem:[%s1 + $0xe0] sm:$0xf]
      %v460 = vld [vmem:[%s1 + $0xe4] sm:$0xf]
      %v461 = vld [vmem:[%s1 + $0xe8] sm:$0xf]
      %v462 = vld [vmem:[%s1 + $0xec] sm:$0xf]
      %v463 = vld [vmem:[%s1 + $0xf0] sm:$0xf]
      %v464 = vld [vmem:[%s1 + $0xf4] sm:$0xf]
      %v465 = vld [vmem:[%s1 + $0xf8] sm:$0xf]
      %v466 = vld [vmem:[%s1 + $0xfc] sm:$0xf]
      %v467 = vld [vmem:[%s1 + $0x100] sm:$0xf]
      %v468 = vld [vmem:[%s1 + $0x104] sm:$0xf]
      %v469 = vld [vmem:[%s1 + $0x108] sm:$0xf]
      %v470 = vld [vmem:[%s1 + $0x10c] sm:$0xf]
      %v471 = vld [vmem:[%s1 + $0x110] sm:$0xf]
      %v472 = vld [vmem:[%s1 + $0x114] sm:$0xf]
      %v473 = vld [vmem:[%s1 + $0x118] sm:$0xf]
      %v474 = vld [vmem:[%s1 + $0x11c] sm:$0xf]
      %v475 = vld [vmem:[%s1 + $0x120] sm:$0xf]
      %v476 = vld [vmem:[%s1 + $0x124] sm:$0xf]
      %v477 = vld [vmem:[%s1 + $0x128] sm:$0xf]
      %v478 = vld [vmem:[%s1 + $0x12c] sm:$0xf]
      %v479 = vld [vmem:[%s1 + $0x130] sm:$0xf]
      %v480 = vld [vmem:[%s1 + $0x134] sm:$0xf]
      %v481 = vld [vmem:[%s1 + $0x138] sm:$0xf]
      %v482 = vld [vmem:[%s1 + $0x13c] sm:$0xf]
      %v483 = vld [vmem:[%s1 + $0x140] sm:$0xf]
      %v484 = vld [vmem:[%s1 + $0x144] sm:$0xf]
      %v485 = vld [vmem:[%s1 + $0x148] sm:$0xf]
      %v486 = vld [vmem:[%s1 + $0x14c] sm:$0xf]
      %v487 = vld [vmem:[%s1 + $0x150] sm:$0xf]
      %v488 = vld [vmem:[%s1 + $0x154] sm:$0xf]
      %v489 = vld [vmem:[%s1 + $0x158] sm:$0xf]
      %v490 = vld [vmem:[%s1 + $0x15c] sm:$0xf]
      %v491 = vld [vmem:[%s1 + $0x160] sm:$0xf]
      %v492 = vld [vmem:[%s1 + $0x164] sm:$0xf]
      %v493 = vld [vmem:[%s1 + $0x168] sm:$0xf]
      %v494 = vld [vmem:[%s1 + $0x16c] sm:$0xf]
      %v495 = vld [vmem:[%s1 + $0x170] sm:$0xf]
      %v496 = vld [vmem:[%s1 + $0x174] sm:$0xf]
      %v497 = vld [vmem:[%s1 + $0x178] sm:$0xf]
      %v498 = vld [vmem:[%s1 + $0x17c] sm:$0xf]
      %v499 = vld [vmem:[%s1 + $0x180] sm:$0xf]
      %v500 = vld [vmem:[%s1 + $0x184] sm:$0xf]
      %v501 = vld [vmem:[%s1 + $0x188] sm:$0xf]
      %v502 = vld [vmem:[%s1 + $0x18c] sm:$0xf]
      %v503 = vld [vmem:[%s1 + $0x190] sm:$0xf]
      %v504 = vld [vmem:[%s1 + $0x194] sm:$0xf]
      %v505 = vld [vmem:[%s1 + $0x198] sm:$0xf]
      %v506 = vld [vmem:[%s1 + $0x19c] sm:$0xf]
      %v507 = vld [vmem:[%s1 + $0x1a0] sm:$0xf]
      %v508 = vld [vmem:[%s1 + $0x1a4] sm:$0xf]
      %v509 = vld [vmem:[%s1 + $0x1a8] sm:$0xf]
      %v510 = vld [vmem:[%s1 + $0x1ac] sm:$0xf]
      %v511 = vld [vmem:[%s1 + $0x1b0] sm:$0xf]
      %v512 = vld [vmem:[%s1 + $0x1b4] sm:$0xf]
      %v513 = vld [vmem:[%s1 + $0x1b8] sm:$0xf]
      %v514 = vld [vmem:[%s1 + $0x1bc] sm:$0xf]
      %v515 = vld [vmem:[%s1 + $0x1c0] sm:$0xf]
      %v516 = vld [vmem:[%s1 + $0x1c4] sm:$0xf]
      %v517 = vld [vmem:[%s1 + $0x1c8] sm:$0xf]
      %v518 = vld [vmem:[%s1 + $0x1cc] sm:$0xf]
      %v519 = vld [vmem:[%s1 + $0x1d0] sm:$0xf]
      %v520 = vld [vmem:[%s1 + $0x1d4] sm:$0xf]
      %v521 = vld [vmem:[%s1 + $0x1d8] sm:$0xf]
      %v522 = vld [vmem:[%s1 + $0x1dc] sm:$0xf]
      %v523 = vld [vmem:[%s1 + $0x1e0] sm:$0xf]
      %v524 = vld [vmem:[%s1 + $0x1e4] sm:$0xf]
      %v525 = vld [vmem:[%s1 + $0x1e8] sm:$0xf]
      %v526 = vld [vmem:[%s1 + $0x1ec] sm:$0xf]
      %v527 = vld [vmem:[%s1 + $0x1f0] sm:$0xf]
      %v528 = vld [vmem:[%s1 + $0x1f4] sm:$0xf]
      %v529 = vld [vmem:[%s1 + $0x1f8] sm:$0xf]
      %v530 = vld [vmem:[%s1 + $0x1fc] sm:$0xf]
      %v531 = vld [vmem:[%s1 + $0x200] sm:$0xf]
      %v532 = vld [vmem:[%s1 + $0x204] sm:$0xf]
      %v533 = vld [vmem:[%s1 + $0x208] sm:$0xf]
      %v534 = vld [vmem:[%s1 + $0x20c] sm:$0xf]
      %v535 = vld [vmem:[%s1 + $0x210] sm:$0xf]
      %v536 = vld [vmem:[%s1 + $0x214] sm:$0xf]
      %v537 = vld [vmem:[%s1 + $0x218] sm:$0xf]
      %v538 = vld [vmem:[%s1 + $0x21c] sm:$0xf]
      %v539 = vld [vmem:[%s1 + $0x220] sm:$0xf]
      %v540 = vld [vmem:[%s1 + $0x224] sm:$0xf]
      %v541 = vld [vmem:[%s1 + $0x228] sm:$0xf]
      %v542 = vld [vmem:[%s1 + $0x22c] sm:$0xf]
      %v543 = vld [vmem:[%s1 + $0x230] sm:$0xf]
      %v544 = vld [vmem:[%s1 + $0x234] sm:$0xf]
      %v545 = vld [vmem:[%s1 + $0x238] sm:$0xf]
      %v546 = vld [vmem:[%s1 + $0x23c] sm:$0xf]
      %v691 = vunpack.c.l.b16 %v403
      %v692 = vunpack.c.l.b16 %v404
      %v693 = vunpack.c.l.b16 %v405
      %v694 = vunpack.c.l.b16 %v406
      %v695 = vunpack.c.l.b16 %v407
      %v696 = vunpack.c.l.b16 %v408
      %v697 = vunpack.c.l.b16 %v409
      %v698 = vunpack.c.l.b16 %v410
      %v699 = vunpack.c.l.b16 %v411
      %v700 = vunpack.c.l.b16 %v412
      %v701 = vunpack.c.l.b16 %v413
      %v702 = vunpack.c.l.b16 %v414
      %v703 = vunpack.c.l.b16 %v415
      %v704 = vunpack.c.l.b16 %v416
      %v705 = vunpack.c.l.b16 %v417
      %v706 = vunpack.c.l.b16 %v418
      %v707 = vunpack.c.l.b16 %v419
      %v708 = vunpack.c.l.b16 %v420
      %v709 = vunpack.c.l.b16 %v421
      %v710 = vunpack.c.l.b16 %v422
      %v711 = vunpack.c.l.b16 %v423
      %v712 = vunpack.c.l.b16 %v424
      %v713 = vunpack.c.l.b16 %v425
      %v714 = vunpack.c.l.b16 %v426
      %v715 = vunpack.c.l.b16 %v427
      %v716 = vunpack.c.l.b16 %v428
      %v717 = vunpack.c.l.b16 %v429
      %v718 = vunpack.c.l.b16 %v430
      %v719 = vunpack.c.l.b16 %v431
      %v720 = vunpack.c.l.b16 %v432
      %v721 = vunpack.c.l.b16 %v433
      %v722 = vunpack.c.l.b16 %v434
      %v723 = vunpack.c.l.b16 %v435
      %v724 = vunpack.c.l.b16 %v436
      %v725 = vunpack.c.l.b16 %v437
      %v726 = vunpack.c.l.b16 %v438
      %v727 = vunpack.c.l.b16 %v439
      %v728 = vunpack.c.l.b16 %v440
      %v729 = vunpack.c.l.b16 %v441
      %v730 = vunpack.c.l.b16 %v442
      %v731 = vunpack.c.l.b16 %v443
      %v732 = vunpack.c.l.b16 %v444
      %v733 = vunpack.c.l.b16 %v445
      %v734 = vunpack.c.l.b16 %v446
      %v735 = vunpack.c.l.b16 %v447
      %v736 = vunpack.c.l.b16 %v448
      %v737 = vunpack.c.l.b16 %v449
      %v738 = vunpack.c.l.b16 %v450
      %v739 = vunpack.c.l.b16 %v451
      %v740 = vunpack.c.l.b16 %v452
      %v741 = vunpack.c.l.b16 %v453
      %v742 = vunpack.c.l.b16 %v454
      %v743 = vunpack.c.l.b16 %v455
      %v744 = vunpack.c.l.b16 %v456
      %v745 = vunpack.c.l.b16 %v457
      %v746 = vunpack.c.l.b16 %v458
      %v747 = vunpack.c.l.b16 %v459
      %v748 = vunpack.c.l.b16 %v460
      %v749 = vunpack.c.l.b16 %v461
      %v750 = vunpack.c.l.b16 %v462
      %v751 = vunpack.c.l.b16 %v463
      %v752 = vunpack.c.l.b16 %v464
      %v753 = vunpack.c.l.b16 %v465
      %v754 = vunpack.c.l.b16 %v466
      %v755 = vunpack.c.l.b16 %v467
      %v756 = vunpack.c.l.b16 %v468
      %v757 = vunpack.c.l.b16 %v469
      %v758 = vunpack.c.l.b16 %v470
      %v759 = vunpack.c.l.b16 %v471
      %v760 = vunpack.c.l.b16 %v472
      %v761 = vunpack.c.l.b16 %v473
      %v762 = vunpack.c.l.b16 %v474
      %v763 = vunpack.c.l.b16 %v475
      %v764 = vunpack.c.l.b16 %v476
      %v765 = vunpack.c.l.b16 %v477
      %v766 = vunpack.c.l.b16 %v478
      %v767 = vunpack.c.l.b16 %v479
      %v768 = vunpack.c.l.b16 %v480
      %v769 = vunpack.c.l.b16 %v481
      %v770 = vunpack.c.l.b16 %v482
      %v771 = vunpack.c.l.b16 %v483
      %v772 = vunpack.c.l.b16 %v484
      %v773 = vunpack.c.l.b16 %v485
      %v774 = vunpack.c.l.b16 %v486
      %v775 = vunpack.c.l.b16 %v487
      %v776 = vunpack.c.l.b16 %v488
      %v777 = vunpack.c.l.b16 %v489
      %v778 = vunpack.c.l.b16 %v490
      %v779 = vunpack.c.l.b16 %v491
      %v780 = vunpack.c.l.b16 %v492
      %v781 = vunpack.c.l.b16 %v493
      %v782 = vunpack.c.l.b16 %v494
      %v783 = vunpack.c.l.b16 %v495
      %v784 = vunpack.c.l.b16 %v496
      %v785 = vunpack.c.l.b16 %v497
      %v786 = vunpack.c.l.b16 %v498
      %v787 = vunpack.c.l.b16 %v499
      %v788 = vunpack.c.l.b16 %v500
      %v789 = vunpack.c.l.b16 %v501
      %v790 = vunpack.c.l.b16 %v502
      %v791 = vunpack.c.l.b16 %v503
      %v792 = vunpack.c.l.b16 %v504
      %v793 = vunpack.c.l.b16 %v505
      %v794 = vunpack.c.l.b16 %v506
      %v795 = vunpack.c.l.b16 %v507
      %v796 = vunpack.c.l.b16 %v508
      %v797 = vunpack.c.l.b16 %v509
      %v798 = vunpack.c.l.b16 %v510
      %v799 = vunpack.c.l.b16 %v511
      %v800 = vunpack.c.l.b16 %v512
      %v801 = vunpack.c.l.b16 %v513
      %v802 = vunpack.c.l.b16 %v514
      %v803 = vunpack.c.l.b16 %v515
      %v804 = vunpack.c.l.b16 %v516
      %v805 = vunpack.c.l.b16 %v517
      %v806 = vunpack.c.l.b16 %v518
      %v807 = vunpack.c.l.b16 %v519
      %v808 = vunpack.c.l.b16 %v520
      %v809 = vunpack.c.l.b16 %v521
      %v810 = vunpack.c.l.b16 %v522
      %v811 = vunpack.c.l.b16 %v523
      %v812 = vunpack.c.l.b16 %v524
      %v813 = vunpack.c.l.b16 %v525
      %v814 = vunpack.c.l.b16 %v526
      %v815 = vunpack.c.l.b16 %v527
      %v816 = vunpack.c.l.b16 %v528
      %v817 = vunpack.c.l.b16 %v529
      %v818 = vunpack.c.l.b16 %v530
      %v819 = vunpack.c.l.b16 %v531
      %v820 = vunpack.c.l.b16 %v532
      %v821 = vunpack.c.l.b16 %v533
      %v822 = vunpack.c.l.b16 %v534
      %v823 = vunpack.c.l.b16 %v535
      %v824 = vunpack.c.l.b16 %v536
      %v825 = vunpack.c.l.b16 %v537
      %v826 = vunpack.c.l.b16 %v538
      %v827 = vunpack.c.l.b16 %v539
      %v828 = vunpack.c.l.b16 %v540
      %v829 = vunpack.c.l.b16 %v541
      %v830 = vunpack.c.l.b16 %v542
      %v831 = vunpack.c.l.b16 %v543
      %v832 = vunpack.c.l.b16 %v544
      %v833 = vunpack.c.l.b16 %v545
      %v834 = vunpack.c.l.b16 %v546
      %v835 = vpack.c.b16 %v692, %v691
      %v836 = vpack.c.b16 %v694, %v693
      %v837 = vpack.c.b16 %v696, %v695
      %v838 = vpack.c.b16 %v698, %v697
      %v839 = vpack.c.b16 %v700, %v699
      %v840 = vpack.c.b16 %v702, %v701
      %v841 = vpack.c.b16 %v704, %v703
      %v842 = vpack.c.b16 %v706, %v705
      %v843 = vpack.c.b16 %v708, %v707
      %v844 = vpack.c.b16 %v710, %v709
      %v845 = vpack.c.b16 %v712, %v711
      %v846 = vpack.c.b16 %v714, %v713
      %v847 = vpack.c.b16 %v716, %v715
      %v848 = vpack.c.b16 %v718, %v717
      %v849 = vpack.c.b16 %v720, %v719
      %v850 = vpack.c.b16 %v722, %v721
      %v851 = vpack.c.b16 %v724, %v723
      %v852 = vpack.c.b16 %v726, %v725
      %v853 = vpack.c.b16 %v728, %v727
      %v854 = vpack.c.b16 %v730, %v729
      %v855 = vpack.c.b16 %v732, %v731
      %v856 = vpack.c.b16 %v734, %v733
      %v857 = vpack.c.b16 %v736, %v735
      %v858 = vpack.c.b16 %v738, %v737
      %v859 = vpack.c.b16 %v740, %v739
      %v860 = vpack.c.b16 %v742, %v741
      %v861 = vpack.c.b16 %v744, %v743
      %v862 = vpack.c.b16 %v746, %v745
      %v863 = vpack.c.b16 %v748, %v747
      %v864 = vpack.c.b16 %v750, %v749
      %v865 = vpack.c.b16 %v752, %v751
      %v866 = vpack.c.b16 %v754, %v753
      %v867 = vpack.c.b16 %v756, %v755
      %v868 = vpack.c.b16 %v758, %v757
      %v869 = vpack.c.b16 %v760, %v759
      %v870 = vpack.c.b16 %v762, %v761
      %v871 = vpack.c.b16 %v764, %v763
      %v872 = vpack.c.b16 %v766, %v765
      %v873 = vpack.c.b16 %v768, %v767
      %v874 = vpack.c.b16 %v770, %v769
      %v875 = vpack.c.b16 %v772, %v771
      %v876 = vpack.c.b16 %v774, %v773
      %v877 = vpack.c.b16 %v776, %v775
      %v878 = vpack.c.b16 %v778, %v777
      %v879 = vpack.c.b16 %v780, %v779
      %v880 = vpack.c.b16 %v782, %v781
      %v881 = vpack.c.b16 %v784, %v783
      %v882 = vpack.c.b16 %v786, %v785
      %v883 = vpack.c.b16 %v788, %v787
      %v884 = vpack.c.b16 %v790, %v789
      %v885 = vpack.c.b16 %v792, %v791
      %v886 = vpack.c.b16 %v794, %v793
      %v887 = vpack.c.b16 %v796, %v795
      %v888 = vpack.c.b16 %v798, %v797
      %v889 = vpack.c.b16 %v800, %v799
      %v890 = vpack.c.b16 %v802, %v801
      %v891 = vpack.c.b16 %v804, %v803
      %v892 = vpack.c.b16 %v806, %v805
      %v893 = vpack.c.b16 %v808, %v807
      %v894 = vpack.c.b16 %v810, %v809
      %v895 = vpack.c.b16 %v812, %v811
      %v896 = vpack.c.b16 %v814, %v813
      %v897 = vpack.c.b16 %v816, %v815
      %v898 = vpack.c.b16 %v818, %v817
      %v899 = vpack.c.b16 %v820, %v819
      %v900 = vpack.c.b16 %v822, %v821
      %v901 = vpack.c.b16 %v824, %v823
      %v902 = vpack.c.b16 %v826, %v825
      %v903 = vpack.c.b16 %v828, %v827
      %v904 = vpack.c.b16 %v830, %v829
      %v905 = vpack.c.b16 %v832, %v831
      %v906 = vpack.c.b16 %v834, %v833
      %979 = vmatprep.subr.bf16.mxu0 0
      %980 = vmatpush1.bf16.msra.mxu0 %v835
      %981 = vmatprep.subr.bf16.mxu0 0
      %982 = vmatpush1.bf16.msra.mxu0 %v836
      %983 = vmatprep.subr.bf16.mxu0 0
      %984 = vmatpush1.bf16.msra.mxu0 %v837
      %985 = vmatprep.subr.bf16.mxu0 0
      %986 = vmatpush1.bf16.msra.mxu0 %v838
      %987 = vmatprep.subr.bf16.mxu0 0
      %988 = vmatpush1.bf16.msra.mxu0 %v839
      %989 = vmatprep.subr.bf16.mxu0 0
      %990 = vmatpush1.bf16.msra.mxu0 %v840
      %991 = vmatprep.subr.bf16.mxu0 0
      %992 = vmatpush1.bf16.msra.mxu0 %v841
      %993 = vmatprep.subr.bf16.mxu0 0
      %994 = vmatpush1.bf16.msra.mxu0 %v842
      %995 = vmatprep.subr.bf16.mxu0 0
      %996 = vmatpush1.bf16.msra.mxu0 %v843
      %997 = vmatprep.subr.bf16.mxu0 0
      %998 = vmatpush1.bf16.msra.mxu0 %v844
      %999 = vmatprep.subr.bf16.mxu0 0
      %1000 = vmatpush1.bf16.msra.mxu0 %v845
      %1001 = vmatprep.subr.bf16.mxu0 0
      %1002 = vmatpush1.bf16.msra.mxu0 %v846
      %1003 = vmatprep.subr.bf16.mxu0 0
      %1004 = vmatpush1.bf16.msra.mxu0 %v847
      %1005 = vmatprep.subr.bf16.mxu0 0
      %1006 = vmatpush1.bf16.msra.mxu0 %v848
      %1007 = vmatprep.subr.bf16.mxu0 0
      %1008 = vmatpush1.bf16.msra.mxu0 %v849
      %1009 = vmatprep.subr.bf16.mxu0 0
      %1010 = vmatpush1.bf16.msra.mxu0 %v850
      %1011 = vmatprep.mubr.bf16.mxu0 %v314
      %1012 = vmatmul.mubr.bf16.gmra.mrb[0].mxu0 %v302
      %v1013 = vpop.f32.mrb[0].mxu0
      %v1014 = vadd.f32 0.0, %v1013
      %v1015 = vpop.f32.mrb[0].mxu0
      %v1016 = vpop.f32.mrb[0].mxu0
      %v1017 = vadd.f32 0.0, %v1016
      %v1018 = vpop.f32.mrb[0].mxu0
      %1019 = vmatprep.mubr.bf16.mxu0 %v315
      %1020 = vmatmul.mubr.bf16.gmra.mrb[0].mxu0 %v303
      %v1021 = vpop.f32.mrb[0].mxu0
      %v1022 = vadd.f32 0.0, %v1021
      %v1023 = vpop.f32.mrb[0].mxu0
      %v1024 = vpop.f32.mrb[0].mxu0
      %v1025 = vadd.f32 0.0, %v1024
      %v1026 = vpop.f32.mrb[0].mxu0
      %1027 = vmatprep.mubr.bf16.mxu0 %v316
      %1028 = vmatmul.mubr.bf16.gmra.mrb[0].mxu0 %v304
      %v1029 = vpop.f32.mrb[0].mxu0
      %v1030 = vadd.f32 0.0, %v1029
      %v1031 = vpop.f32.mrb[0].mxu0
      %v1032 = vpop.f32.mrb[0].mxu0
      %v1033 = vadd.f32 0.0, %v1032
      %v1034 = vpop.f32.mrb[0].mxu0
      %1035 = vmatprep.mubr.bf16.mxu0 %v317
      %1036 = vmatmul.mubr.bf16.gmra.mrb[0].mxu0 %v305
      %v1037 = vpop.f32.mrb[0].mxu0
      %v1038 = vadd.f32 0.0, %v1037
      %v1039 = vpop.f32.mrb[0].mxu0
      %v1040 = vpop.f32.mrb[0].mxu0
      %v1041 = vadd.f32 0.0, %v1040
      %v1042 = vpop.f32.mrb[0].mxu0
      %1043 = vdwg.mxu0
      %1044 = vmatprep.subr.bf16.mxu0 0
      %1045 = vmatpush1.bf16.msra.mxu0 %v851
      %1046 = vmatprep.subr.bf16.mxu0 0
      %1047 = vmatpush1.bf16.msra.mxu0 %v852
      %1048 = vmatprep.subr.bf16.mxu0 0
      %1049 = vmatpush1.bf16.msra.mxu0 %v853
      %1050 = vmatprep.subr.bf16.mxu0 0
      %1051 = vmatpush1.bf16.msra.mxu0 %v854
      %1052 = vmatprep.subr.bf16.mxu0 0
      %1053 = vmatpush1.bf16.msra.mxu0 %v855
      %1054 = vmatprep.subr.bf16.mxu0 0
      %1055 = vmatpush1.bf16.msra.mxu0 %v856
      %1056 = vmatprep.subr.bf16.mxu0 0
      %1057 = vmatpush1.bf16.msra.mxu0 %v857
      %1058 = vmatprep.subr.bf16.mxu0 0
      %1059 = vmatpush1.bf16.msra.mxu0 %v858
      %1060 = vmatprep.subr.bf16.mxu0 0
      %1061 = vmatpush1.bf16.msra.mxu0 %v859
      %1062 = vmatprep.subr.bf16.mxu0 0
      %1063 = vmatpush1.bf16.msra.mxu0 %v860
      %1064 = vmatprep.subr.bf16.mxu0 0
      %1065 = vmatpush1.bf16.msra.mxu0 %v861
      %1066 = vmatprep.subr.bf16.mxu0 0
      %1067 = vmatpush1.bf16.msra.mxu0 %v862
      %1068 = vmatprep.subr.bf16.mxu0 0
      %1069 = vmatpush1.bf16.msra.mxu0 %v863
      %1070 = vmatprep.subr.bf16.mxu0 0
      %1071 = vmatpush1.bf16.msra.mxu0 %v864
      %1072 = vmatprep.subr.bf16.mxu0 0
      %1073 = vmatpush1.bf16.msra.mxu0 %v865
      %1074 = vmatprep.subr.bf16.mxu0 0
      %1075 = vmatpush1.bf16.msra.mxu0 %v866
      %1076 = vmatprep.mubr.bf16.mxu0 %v338
      %1077 = vmatmul.mubr.bf16.gmra.mrb[0].mxu0 %v326
      %v1078 = vpop.f32.mrb[0].mxu0
      %v1079 = vadd.f32 %v1014, %v1078
      %v1080 = vpop.f32.mrb[0].mxu0
      %v1081 = vpop.f32.mrb[0].mxu0
      %v1082 = vadd.f32 %v1017, %v1081
      %v1083 = vpop.f32.mrb[0].mxu0
      %1084 = vmatprep.mubr.bf16.mxu0 %v339
      %1085 = vmatmul.mubr.bf16.gmra.mrb[0].mxu0 %v327
      %v1086 = vpop.f32.mrb[0].mxu0
      %v1087 = vadd.f32 %v1022, %v1086
      %v1088 = vpop.f32.mrb[0].mxu0
      %v1089 = vpop.f32.mrb[0].mxu0
      %v1090 = vadd.f32 %v1025, %v1089
      %v1091 = vpop.f32.mrb[0].mxu0
      %1092 = vmatprep.mubr.bf16.mxu0 %v340
      %1093 = vmatmul.mubr.bf16.gmra.mrb[0].mxu0 %v328
      %v1094 = vpop.f32.mrb[0].mxu0
      %v1095 = vadd.f32 %v1030, %v1094
      %v1096 = vpop.f32.mrb[0].mxu0
      %v1097 = vpop.f32.mrb[0].mxu0
      %v1098 = vadd.f32 %v1033, %v1097
      %v1099 = vpop.f32.mrb[0].mxu0
      %1100 = vmatprep.mubr.bf16.mxu0 %v341
      %1101 = vmatmul.mubr.bf16.gmra.mrb[0].mxu0 %v329
      %v1102 = vpop.f32.mrb[0].mxu0
      %v1103 = vadd.f32 %v1038, %v1102
      %v1104 = vpop.f32.mrb[0].mxu0
      %v1105 = vpop.f32.mrb[0].mxu0
      %v1106 = vadd.f32 %v1041, %v1105
      %v1107 = vpop.f32.mrb[0].mxu0
      %1108 = vdwg.mxu0
      %1109 = vmatprep.subr.bf16.mxu0 0
      %1110 = vmatpush1.bf16.msra.mxu0 %v867
      %1111 = vmatprep.subr.bf16.mxu0 0
      %1112 = vmatpush1.bf16.msra.mxu0 %v868
      %1113 = vmatprep.subr.bf16.mxu0 0
      %1114 = vmatpush1.bf16.msra.mxu0 %v869
      %1115 = vmatprep.subr.bf16.mxu0 0
      %1116 = vmatpush1.bf16.msra.mxu0 %v870
      %1117 = vmatprep.subr.bf16.mxu0 0
      %1118 = vmatpush1.bf16.msra.mxu0 %v871
      %1119 = vmatprep.subr.bf16.mxu0 0
      %1120 = vmatpush1.bf16.msra.mxu0 %v872
      %1121 = vmatprep.subr.bf16.mxu0 0
      %1122 = vmatpush1.bf16.msra.mxu0 %v873
      %1123 = vmatprep.subr.bf16.mxu0 0
      %1124 = vmatpush1.bf16.msra.mxu0 %v874
      %1125 = vmatprep.subr.bf16.mxu0 0
      %1126 = vmatpush1.bf16.msra.mxu0 %v875
      %1127 = vmatprep.subr.bf16.mxu0 0
      %1128 = vmatpush1.bf16.msra.mxu0 %v876
      %1129 = vmatprep.subr.bf16.mxu0 0
      %1130 = vmatpush1.bf16.msra.mxu0 %v877
      %1131 = vmatprep.subr.bf16.mxu0 0
      %1132 = vmatpush1.bf16.msra.mxu0 %v878
      %1133 = vmatprep.subr.bf16.mxu0 0
      %1134 = vmatpush1.bf16.msra.mxu0 %v879
      %1135 = vmatprep.subr.bf16.mxu0 0
      %1136 = vmatpush1.bf16.msra.mxu0 %v880
      %1137 = vmatprep.subr.bf16.mxu0 0
      %1138 = vmatpush1.bf16.msra.mxu0 %v881
      %1139 = vmatprep.subr.bf16.mxu0 0
      %1140 = vmatpush1.bf16.msra.mxu0 %v882
      %1141 = vmatprep.mubr.bf16.mxu0 %v362
      %1142 = vmatmul.mubr.bf16.gmra.mrb[0].mxu0 %v350
      %v1143 = vpop.f32.mrb[0].mxu0
      %v1144 = vadd.f32 %v1079, %v1143
      %v1145 = vpop.f32.mrb[0].mxu0
      %v1146 = vpop.f32.mrb[0].mxu0
      %v1147 = vadd.f32 %v1082, %v1146
      %v1148 = vpop.f32.mrb[0].mxu0
      %1149 = vmatprep.mubr.bf16.mxu0 %v363
      %1150 = vmatmul.mubr.bf16.gmra.mrb[0].mxu0 %v351
      %v1151 = vpop.f32.mrb[0].mxu0
      %v1152 = vadd.f32 %v1087, %v1151
      %v1153 = vpop.f32.mrb[0].mxu0
      %v1154 = vpop.f32.mrb[0].mxu0
      %v1155 = vadd.f32 %v1090, %v1154
      %v1156 = vpop.f32.mrb[0].mxu0
      %1157 = vmatprep.mubr.bf16.mxu0 %v364
      %1158 = vmatmul.mubr.bf16.gmra.mrb[0].mxu0 %v352
      %v1159 = vpop.f32.mrb[0].mxu0
      %v1160 = vadd.f32 %v1095, %v1159
      %v1161 = vpop.f32.mrb[0].mxu0
      %v1162 = vpop.f32.mrb[0].mxu0
      %v1163 = vadd.f32 %v1098, %v1162
      %v1164 = vpop.f32.mrb[0].mxu0
      %1165 = vmatprep.mubr.bf16.mxu0 %v365
      %1166 = vmatmul.mubr.bf16.gmra.mrb[0].mxu0 %v353
      %v1167 = vpop.f32.mrb[0].mxu0
      %v1168 = vadd.f32 %v1103, %v1167
      %v1169 = vpop.f32.mrb[0].mxu0
      %v1170 = vpop.f32.mrb[0].mxu0
      %v1171 = vadd.f32 %v1106, %v1170
      %v1172 = vpop.f32.mrb[0].mxu0
      %1173 = vdwg.mxu0
      %1174 = vmatprep.subr.bf16.mxu0 0
      %1175 = vmatpush1.bf16.msra.mxu0 %v883
      %1176 = vmatprep.subr.bf16.mxu0 0
      %1177 = vmatpush1.bf16.msra.mxu0 %v884
      %1178 = vmatprep.subr.bf16.mxu0 0
      %1179 = vmatpush1.bf16.msra.mxu0 %v885
      %1180 = vmatprep.subr.bf16.mxu0 0
      %1181 = vmatpush1.bf16.msra.mxu0 %v886
      %1182 = vmatprep.subr.bf16.mxu0 0
      %1183 = vmatpush1.bf16.msra.mxu0 %v887
      %1184 = vmatprep.subr.bf16.mxu0 0
      %1185 = vmatpush1.bf16.msra.mxu0 %v888
      %1186 = vmatprep.subr.bf16.mxu0 0
      %1187 = vmatpush1.bf16.msra.mxu0 %v889
      %1188 = vmatprep.subr.bf16.mxu0 0
      %1189 = vmatpush1.bf16.msra.mxu0 %v890
      %1190 = vmatprep.subr.bf16.mxu0 0
      %1191 = vmatpush1.bf16.msra.mxu0 %v891
      %1192 = vmatprep.subr.bf16.mxu0 0
      %1193 = vmatpush1.bf16.msra.mxu0 %v892
      %1194 = vmatprep.subr.bf16.mxu0 0
      %1195 = vmatpush1.bf16.msra.mxu0 %v893
      %1196 = vmatprep.subr.bf16.mxu0 0
      %1197 = vmatpush1.bf16.msra.mxu0 %v894
      %1198 = vmatprep.subr.bf16.mxu0 0
      %1199 = vmatpush1.bf16.msra.mxu0 %v895
      %1200 = vmatprep.subr.bf16.mxu0 0
      %1201 = vmatpush1.bf16.msra.mxu0 %v896
      %1202 = vmatprep.subr.bf16.mxu0 0
      %1203 = vmatpush1.bf16.msra.mxu0 %v897
      %1204 = vmatprep.subr.bf16.mxu0 0
      %1205 = vmatpush1.bf16.msra.mxu0 %v898
      %1206 = vmatprep.mubr.bf16.mxu0 %v387
      %1207 = vmatmul.mubr.bf16.gmra.mrb[0].mxu0 %v375
      %v1208 = vpop.f32.mrb[0].mxu0
      %v1209 = vadd.f32 %v1144, %v1208
      %v1210 = vpop.f32.mrb[0].mxu0
      %v1211 = vpop.f32.mrb[0].mxu0
      %v1212 = vadd.f32 %v1147, %v1211
      %v1213 = vpop.f32.mrb[0].mxu0
      %1214 = vmatprep.mubr.bf16.mxu0 %v388
      %1215 = vmatmul.mubr.bf16.gmra.mrb[0].mxu0 %v376
      %v1216 = vpop.f32.mrb[0].mxu0
      %v1217 = vadd.f32 %v1152, %v1216
      %v1218 = vpop.f32.mrb[0].mxu0
      %v1219 = vpop.f32.mrb[0].mxu0
      %v1220 = vadd.f32 %v1155, %v1219
      %v1221 = vpop.f32.mrb[0].mxu0
      %1222 = vmatprep.mubr.bf16.mxu0 %v389
      %1223 = vmatmul.mubr.bf16.gmra.mrb[0].mxu0 %v377
      %v1224 = vpop.f32.mrb[0].mxu0
      %v1225 = vadd.f32 %v1160, %v1224
      %v1226 = vpop.f32.mrb[0].mxu0
      %v1227 = vpop.f32.mrb[0].mxu0
      %v1228 = vadd.f32 %v1163, %v1227
      %v1229 = vpop.f32.mrb[0].mxu0
      %1230 = vmatprep.mubr.bf16.mxu0 %v390
      %1231 = vmatmul.mubr.bf16.gmra.mrb[0].mxu0 %v378
      %v1232 = vpop.f32.mrb[0].mxu0
      %v1233 = vadd.f32 %v1168, %v1232
      %v1234 = vpop.f32.mrb[0].mxu0
      %v1235 = vpop.f32.mrb[0].mxu0
      %v1236 = vadd.f32 %v1171, %v1235
      %v1237 = vpop.f32.mrb[0].mxu0
      %1238 = vdwg.mxu0
      %1239 = vmatprep.subr.bf16.mxu0 0
      %1240 = vmatpush1.bf16.msra.mxu0 %v899
      %1241 = vmatprep.subr.bf16.mxu0 0
      %1242 = vmatpush1.bf16.msra.mxu0 %v900
      %1243 = vmatprep.subr.bf16.mxu0 0
      %1244 = vmatpush1.bf16.msra.mxu0 %v901
      %1245 = vmatprep.subr.bf16.mxu0 0
      %1246 = vmatpush1.bf16.msra.mxu0 %v902
      %1247 = vmatprep.subr.bf16.mxu0 0
      %1248 = vmatpush1.bf16.msra.mxu0 %v903
      %1249 = vmatprep.subr.bf16.mxu0 0
      %1250 = vmatpush1.bf16.msra.mxu0 %v904
      %1251 = vmatprep.subr.bf16.mxu0 0
      %1252 = vmatpush1.bf16.msra.mxu0 %v905
      %1253 = vmatprep.subr.bf16.mxu0 0
      %1254 = vmatpush1.bf16.msra.mxu0 %v906
      %1255 = vmatprep.subr.bf16.mxu0 0
      %1256 = vmatpush1.bf16.msra.mxu0 0
      %1257 = vmatprep.subr.bf16.mxu0 0
      %1258 = vmatpush1.bf16.msra.mxu0 0
      %1259 = vmatprep.subr.bf16.mxu0 0
      %1260 = vmatpush1.bf16.msra.mxu0 0
      %1261 = vmatprep.subr.bf16.mxu0 0
      %1262 = vmatpush1.bf16.msra.mxu0 0
      %1263 = vmatprep.subr.bf16.mxu0 0
      %1264 = vmatpush1.bf16.msra.mxu0 0
      %1265 = vmatprep.subr.bf16.mxu0 0
      %1266 = vmatpush1.bf16.msra.mxu0 0
      %1267 = vmatprep.subr.bf16.mxu0 0
      %1268 = vmatpush1.bf16.msra.mxu0 0
      %1269 = vmatprep.subr.bf16.mxu0 0
      %1270 = vmatpush1.bf16.msra.mxu0 0
      %1271 = vmatprep.mubr.bf16.mxu0 0
      %1272 = vmatmul.mubr.bf16.gmra.mrb[0].mxu0 %v399
      %v1273 = vpop.f32.mrb[0].mxu0
      %v1274 = vadd.f32 %v1209, %v1273
      %v1275 = vpop.f32.mrb[0].mxu0
      %v1276 = vpop.f32.mrb[0].mxu0
      %v1277 = vadd.f32 %v1212, %v1276
      %v1278 = vpop.f32.mrb[0].mxu0
      %1279 = vmatprep.mubr.bf16.mxu0 0
      %1280 = vmatmul.mubr.bf16.gmra.mrb[0].mxu0 %v400
      %v1281 = vpop.f32.mrb[0].mxu0
      %v1282 = vadd.f32 %v1217, %v1281
      %v1283 = vpop.f32.mrb[0].mxu0
      %v1284 = vpop.f32.mrb[0].mxu0
      %v1285 = vadd.f32 %v1220, %v1284
      %v1286 = vpop.f32.mrb[0].mxu0
      %1287 = vmatprep.mubr.bf16.mxu0 0
      %1288 = vmatmul.mubr.bf16.gmra.mrb[0].mxu0 %v401
      %v1289 = vpop.f32.mrb[0].mxu0
      %v1290 = vadd.f32 %v1225, %v1289
      %v1291 = vpop.f32.mrb[0].mxu0
      %v1292 = vpop.f32.mrb[0].mxu0
      %v1293 = vadd.f32 %v1228, %v1292
      %v1294 = vpop.f32.mrb[0].mxu0
      %1295 = vmatprep.mubr.bf16.mxu0 0
      %1296 = vmatmul.mubr.bf16.gmra.mrb[0].mxu0 %v402
      %v1297 = vpop.f32.mrb[0].mxu0
      %v1298 = vadd.f32 %v1233, %v1297
      %v1299 = vpop.f32.mrb[0].mxu0
      %v1300 = vpop.f32.mrb[0].mxu0
      %v1301 = vadd.f32 %v1236, %v1300
      %v1302 = vpop.f32.mrb[0].mxu0
      %1303 = vdwg.mxu0
      %v1304 = vld [vmem:[%s3] sm:$0x1]
      %v1306 = vlaneseq
      %v1307 = vshrl.u32 %v1306, 7
      %v1308 = vsub.s32 0, %v1307
      %v1309 = vrot.slane %v1304, %v1308
      %1310 = vrot.lane.b32.xlu0 %v1309, 64
      %v1311 = vpop.permute.xlu0 %1310
      %v1313 = vadd.f32 %v1274, %v1311
      %v1314 = vadd.f32 %v1277, %v1311
      %v1315 = vadd.f32 %v1282, %v1311
      %v1316 = vadd.f32 %v1285, %v1311
      %v1317 = vadd.f32 %v1290, %v1311
      %v1318 = vadd.f32 %v1293, %v1311
      %v1319 = vadd.f32 %v1298, %v1311
      %v1320 = vadd.f32 %v1301, %v1311
      %vm1321 = vcmask 523264
      %v1322 = vsel %vm1321, %v1274, 0.0
      %v1323 = vsel %vm1321, %v1277, 0.0
      %v1324 = vadd.f32 %v1322, %v1323
      %v1325 = vsel %vm1321, %v1282, 0.0
      %v1326 = vadd.f32 %v1324, %v1325
      %v1327 = vsel %vm1321, %v1285, 0.0
      %v1328 = vadd.f32 %v1326, %v1327
      %v1329 = vsel %vm1321, %v1290, 0.0
      %v1330 = vadd.f32 %v1328, %v1329
      %v1331 = vsel %vm1321, %v1293, 0.0
      %v1332 = vadd.f32 %v1330, %v1331
      %v1333 = vsel %vm1321, %v1298, 0.0
      %v1334 = vadd.f32 %v1332, %v1333
      %v1335 = vsel %vm1321, %v1301, 0.0
      %v1336 = vadd.f32 %v1334, %v1335
      %v1337 = vrot.slane %v1336, 4
      %v1338 = vadd.f32 %v1336, %v1337
      %v1339 = vrot.slane %v1338, 2
      %v1340 = vadd.f32 %v1338, %v1339
      %v1341 = vrot.slane %v1340, 1
      %v1342 = vadd.f32 %v1340, %v1341
      %v1343 = vmul.f32 %v1274, %v1274
      %v1344 = vmul.f32 %v1277, %v1277
      %v1345 = vmul.f32 %v1282, %v1282
      %v1346 = vmul.f32 %v1285, %v1285
      %v1347 = vmul.f32 %v1290, %v1290
      %v1348 = vmul.f32 %v1293, %v1293
      %v1349 = vmul.f32 %v1298, %v1298
      %v1350 = vmul.f32 %v1301, %v1301
      %v1351 = vsel %vm1321, %v1343, 0.0
      %v1352 = vsel %vm1321, %v1344, 0.0
      %v1353 = vadd.f32 %v1351, %v1352
      %v1354 = vsel %vm1321, %v1345, 0.0
      %v1355 = vadd.f32 %v1353, %v1354
      %v1356 = vsel %vm1321, %v1346, 0.0
      %v1357 = vadd.f32 %v1355, %v1356
      %v1358 = vsel %vm1321, %v1347, 0.0
      %v1359 = vadd.f32 %v1357, %v1358
      %v1360 = vsel %vm1321, %v1348, 0.0
      %v1361 = vadd.f32 %v1359, %v1360
      %v1362 = vsel %vm1321, %v1349, 0.0
      %v1363 = vadd.f32 %v1361, %v1362
      %v1364 = vsel %vm1321, %v1350, 0.0
      %v1365 = vadd.f32 %v1363, %v1364
      %v1366 = vrot.slane %v1365, 4
      %v1367 = vadd.f32 %v1365, %v1366
      %v1368 = vrot.slane %v1367, 2
      %v1369 = vadd.f32 %v1367, %v1368
      %v1370 = vrot.slane %v1369, 1
      %v1371 = vadd.f32 %v1369, %v1370
      %vm1372 = vcmask 1040384
      %v1373 = vsel %vm1372, %v1342, %v1371
      %v1374 = vld [vmem:[%s4] sm:$0xff]
      %v1375 = vld [vmem:[%s4 + $0x8] sm:$0xff]
      %v1376 = vld [vmem:[%s4 + $0x10] sm:$0xff]
      %v1377 = vld [vmem:[%s4 + $0x18] sm:$0xff]
      %v1378 = vld [vmem:[%s4 + $0x20] sm:$0xff]
      %v1379 = vld [vmem:[%s4 + $0x28] sm:$0xff]
      %v1380 = vld [vmem:[%s4 + $0x30] sm:$0xff]
      %v1381 = vld [vmem:[%s4 + $0x38] sm:$0xff]
      %v1383 = vsel %vm1321, %v1373, 0
      %1385 = vmatprep.subr.mxu0 0.0
      %1386 = vmatpush1.msra.mxu0 %v1374
      %1387 = vmatprep.subr.mxu0 0.0
      %1388 = vmatpush1.msra.mxu0 %v1375
      %1389 = vmatprep.subr.mxu0 0.0
      %1390 = vmatpush1.msra.mxu0 %v1376
      %1391 = vmatprep.subr.mxu0 0.0
      %1392 = vmatpush1.msra.mxu0 %v1377
      %1393 = vmatprep.subr.mxu0 0.0
      %1394 = vmatpush1.msra.mxu0 %v1378
      %1395 = vmatprep.subr.mxu0 0.0
      %1396 = vmatpush1.msra.mxu0 %v1379
      %1397 = vmatprep.subr.mxu0 0.0
      %1398 = vmatpush1.msra.mxu0 %v1380
      %1399 = vmatprep.subr.mxu0 0.0
      %1400 = vmatpush1.msra.mxu0 %v1381
      %1401 = vmatprep.subr.mxu0 0.0
      %1402 = vmatpush1.msra.mxu0 0.0
      %1403 = vmatprep.subr.mxu0 0.0
      %1404 = vmatpush1.msra.mxu0 0.0
      %1405 = vmatprep.subr.mxu0 0.0
      %1406 = vmatpush1.msra.mxu0 0.0
      %1407 = vmatprep.subr.mxu0 0.0
      %1408 = vmatpush1.msra.mxu0 0.0
      %1409 = vmatprep.subr.mxu0 0.0
      %1410 = vmatpush1.msra.mxu0 0.0
      %1411 = vmatprep.subr.mxu0 0.0
      %1412 = vmatpush1.msra.mxu0 0.0
      %1413 = vmatprep.subr.mxu0 0.0
      %1414 = vmatpush1.msra.mxu0 0.0
      %1415 = vmatprep.subr.mxu0 0.0
      %1416 = vmatpush1.msra.mxu0 0.0
      %1417 = vmatprep.subr.mxu0 0.0
      %1418 = vmatpush1.msra.mxu0 0.0
      %1419 = vmatprep.subr.mxu0 0.0
      %1420 = vmatpush1.msra.mxu0 0.0
      %1421 = vmatprep.subr.mxu0 0.0
      %1422 = vmatpush1.msra.mxu0 0.0
      %1423 = vmatprep.subr.mxu0 0.0
      %1424 = vmatpush1.msra.mxu0 0.0
      %1425 = vmatprep.subr.mxu0 0.0
      %1426 = vmatpush1.msra.mxu0 0.0
      %1427 = vmatprep.subr.mxu0 0.0
      %1428 = vmatpush1.msra.mxu0 0.0
      %1429 = vmatprep.subr.mxu0 0.0
      %1430 = vmatpush1.msra.mxu0 0.0
      %1431 = vmatprep.subr.mxu0 0.0
      %1432 = vmatpush1.msra.mxu0 0.0
      %1433 = vmatprep.subr.mxu0 0.0
      %1434 = vmatpush1.msra.mxu0 0.0
      %1435 = vmatprep.subr.mxu0 0.0
      %1436 = vmatpush1.msra.mxu0 0.0
      %1437 = vmatprep.subr.mxu0 0.0
      %1438 = vmatpush1.msra.mxu0 0.0
      %1439 = vmatprep.subr.mxu0 0.0
      %1440 = vmatpush1.msra.mxu0 0.0
      %1441 = vmatprep.subr.mxu0 0.0
      %1442 = vmatpush1.msra.mxu0 0.0
      %1443 = vmatprep.subr.mxu0 0.0
      %1444 = vmatpush1.msra.mxu0 0.0
      %1445 = vmatprep.subr.mxu0 0.0
      %1446 = vmatpush1.msra.mxu0 0.0
      %1447 = vmatprep.subr.mxu0 0.0
      %1448 = vmatpush1.msra.mxu0 0.0
      %1449 = vmatprep.mubr.f32.mxu0 0.0
      %1450 = vmatmul.mubr.f32.gmra.mrb[0].mxu0 %v1383
      %v1451 = vpop.f32.mrb[0].mxu0
      %v1452 = vadd.f32 0.0, %v1451
      %v1453 = vpop.f32.mrb[0].mxu0
      %1454 = vdwg.mxu0
      %v1455 = vmul.f32 %v1452, 0.001953125
      %v1456 = vmul.f32 %v1455, %v1455
      %v1458 = vrot.slane %v1456, 7
      %v1460 = vsub.f32 %v1455, %v1458
      %v1461 = vmax.f32 %v1460, 0.0
      %v1462 = vadd.f32 %v1461, 1e-05
      %v1463 = vrsqrt.pop %v1462
      %v1464 = vlaneseq
      %v1465 = vshrl.u32 %v1464, 7
      %v1466 = vsub.s32 0, %v1465
      %v1467 = vrot.slane %v1455, %v1466
      %v1468 = vsub.f32 %v1274, %v1467
      %v1469 = vsub.f32 %v1277, %v1467
      %v1470 = vsub.f32 %v1282, %v1467
      %v1471 = vsub.f32 %v1285, %v1467
      %v1472 = vsub.f32 %v1290, %v1467
      %v1473 = vsub.f32 %v1293, %v1467
      %v1474 = vsub.f32 %v1298, %v1467
      %v1475 = vsub.f32 %v1301, %v1467
      %v1476 = vlaneseq
      %v1477 = vshrl.u32 %v1476, 7
      %v1478 = vsub.s32 1, %v1477
      %v1479 = vrot.slane %v1463, %v1478
      %v1480 = vmul.f32 %v1468, %v1479
      %v1481 = vmul.f32 %v1469, %v1479
      %v1482 = vmul.f32 %v1470, %v1479
      %v1483 = vmul.f32 %v1471, %v1479
      %v1484 = vmul.f32 %v1472, %v1479
      %v1485 = vmul.f32 %v1473, %v1479
      %v1486 = vmul.f32 %v1474, %v1479
      %v1487 = vmul.f32 %v1475, %v1479
      %vm1488 = vcmp.ge.f32.partialorder %v1480, 0.0
      %vm1489 = vcmp.ge.f32.partialorder %v1481, 0.0
      %vm1490 = vcmp.ge.f32.partialorder %v1482, 0.0
      %vm1491 = vcmp.ge.f32.partialorder %v1483, 0.0
      %vm1492 = vcmp.ge.f32.partialorder %v1484, 0.0
      %vm1493 = vcmp.ge.f32.partialorder %v1485, 0.0
      %vm1494 = vcmp.ge.f32.partialorder %v1486, 0.0
      %vm1495 = vcmp.ge.f32.partialorder %v1487, 0.0
      %v1496 = vmul.f32 %v1480, 0.0
      %v1497 = vmul.f32 %v1481, 0.0
      %v1498 = vmul.f32 %v1482, 0.0
      %v1499 = vmul.f32 %v1483, 0.0
      %v1500 = vmul.f32 %v1484, 0.0
      %v1501 = vmul.f32 %v1485, 0.0
      %v1502 = vmul.f32 %v1486, 0.0
      %v1503 = vmul.f32 %v1487, 0.0
      %v1504 = vsel %vm1488, %v1480, %v1496
      %v1505 = vsel %vm1489, %v1481, %v1497
      %v1506 = vsel %vm1490, %v1482, %v1498
      %v1507 = vsel %vm1491, %v1483, %v1499
      %v1508 = vsel %vm1492, %v1484, %v1500
      %v1509 = vsel %vm1493, %v1485, %v1501
      %v1510 = vsel %vm1494, %v1486, %v1502
      %v1511 = vsel %vm1495, %v1487, %v1503
      %v1512 = vsel %vm1321, %v1504, 0.0
      %v1513 = vsel %vm1321, %v1505, 0.0
      %v1514 = vsel %vm1321, %v1506, 0.0
      %v1515 = vsel %vm1321, %v1507, 0.0
      %v1516 = vsel %vm1321, %v1508, 0.0
      %v1517 = vsel %vm1321, %v1509, 0.0
      %v1518 = vsel %vm1321, %v1510, 0.0
      %v1519 = vsel %vm1321, %v1511, 0.0
      %1520 = vst [vmem:[%s261 + $0x3] sm:$0xff] %v1512
      %1521 = vst [vmem:[%s261 + $0x13] sm:$0xff] %v1513
      %1522 = vst [vmem:[%s261 + $0x23] sm:$0xff] %v1514
      %1523 = vst [vmem:[%s261 + $0x33] sm:$0xff] %v1515
      %1524 = vst [vmem:[%s261 + $0x43] sm:$0xff] %v1516
      %1525 = vst [vmem:[%s261 + $0x53] sm:$0xff] %v1517
      %1526 = vst [vmem:[%s261 + $0x63] sm:$0xff] %v1518
      %1527 = vst [vmem:[%s261 + $0x73] sm:$0xff] %v1519
      %v1528 = vld [vmem:[#allocation3] sm:$0xff]
      %v1529 = vld [vmem:[#allocation3 + $0x10] sm:$0xff]
      %v1530 = vld [vmem:[#allocation3 + $0x20] sm:$0xff]
      %v1531 = vld [vmem:[#allocation3 + $0x30] sm:$0xff]
      %v1532 = vld [vmem:[#allocation3 + $0x40] sm:$0xff]
      %v1533 = vld [vmem:[#allocation3 + $0x50] sm:$0xff]
      %v1534 = vld [vmem:[#allocation3 + $0x60] sm:$0xff]
      %v1535 = vld [vmem:[#allocation3 + $0x70] sm:$0xff]
      %v1536 = vpack.c.bf16 %v1529, %v1528
      %v1537 = vpack.c.bf16 %v1531, %v1530
      %v1538 = vpack.c.bf16 %v1533, %v1532
      %v1539 = vpack.c.bf16 %v1535, %v1534
      %v1540 = vld [vmem:[#allocation3 + $0x3] sm:$0xff]
      %v1541 = vld [vmem:[#allocation3 + $0x13] sm:$0xff]
      %v1542 = vld [vmem:[#allocation3 + $0x23] sm:$0xff]
      %v1543 = vld [vmem:[#allocation3 + $0x33] sm:$0xff]
      %v1544 = vld [vmem:[#allocation3 + $0x43] sm:$0xff]
      %v1545 = vld [vmem:[#allocation3 + $0x53] sm:$0xff]
      %v1546 = vld [vmem:[#allocation3 + $0x63] sm:$0xff]
      %v1547 = vld [vmem:[#allocation3 + $0x73] sm:$0xff]
      %v1548 = vpack.c.bf16 %v1541, %v1540
      %v1549 = vpack.c.bf16 %v1543, %v1542
      %v1550 = vpack.c.bf16 %v1545, %v1544
      %v1551 = vpack.c.bf16 %v1547, %v1546
      %v1552 = vld [vmem:[#allocation3 + $0x6] sm:$0xff]
      %v1553 = vld [vmem:[#allocation3 + $0x16] sm:$0xff]
      %v1554 = vld [vmem:[#allocation3 + $0x26] sm:$0xff]
      %v1555 = vld [vmem:[#allocation3 + $0x36] sm:$0xff]
      %v1556 = vld [vmem:[#allocation3 + $0x46] sm:$0xff]
      %v1557 = vld [vmem:[#allocation3 + $0x56] sm:$0xff]
      %v1558 = vld [vmem:[#allocation3 + $0x66] sm:$0xff]
      %v1559 = vld [vmem:[#allocation3 + $0x76] sm:$0xff]
      %v1560 = vpack.c.bf16 %v1553, %v1552
      %v1561 = vpack.c.bf16 %v1555, %v1554
      %v1562 = vpack.c.bf16 %v1557, %v1556
      %v1563 = vpack.c.bf16 %v1559, %v1558
      %v1564 = vld [vmem:[%s261] sm:$0xff]
      %v1565 = vld [vmem:[%s261 + $0x10] sm:$0xff]
      %v1566 = vld [vmem:[%s261 + $0x20] sm:$0xff]
      %v1567 = vld [vmem:[%s261 + $0x30] sm:$0xff]
      %v1568 = vld [vmem:[%s261 + $0x40] sm:$0xff]
      %v1569 = vld [vmem:[%s261 + $0x50] sm:$0xff]
      %v1570 = vld [vmem:[%s261 + $0x60] sm:$0xff]
      %v1571 = vld [vmem:[%s261 + $0x70] sm:$0xff]
      %v1572 = vpack.c.bf16 %v1565, %v1564
      %v1573 = vpack.c.bf16 %v1567, %v1566
      %v1574 = vpack.c.bf16 %v1569, %v1568
      %v1575 = vpack.c.bf16 %v1571, %v1570
      %v1576 = vld [vmem:[%s261 + $0x3] sm:$0xff]
      %v1577 = vld [vmem:[%s261 + $0x13] sm:$0xff]
      %v1578 = vld [vmem:[%s261 + $0x23] sm:$0xff]
      %v1579 = vld [vmem:[%s261 + $0x33] sm:$0xff]
      %v1580 = vld [vmem:[%s261 + $0x43] sm:$0xff]
      %v1581 = vld [vmem:[%s261 + $0x53] sm:$0xff]
      %v1582 = vld [vmem:[%s261 + $0x63] sm:$0xff]
      %v1583 = vld [vmem:[%s261 + $0x73] sm:$0xff]
      %v1584 = vpack.c.bf16 %v1577, %v1576
      %v1585 = vpack.c.bf16 %v1579, %v1578
      %v1586 = vpack.c.bf16 %v1581, %v1580
      %v1587 = vpack.c.bf16 %v1583, %v1582
      %v1588 = vld [vmem:[%s261 + $0x6] sm:$0xff]
      %v1589 = vld [vmem:[%s261 + $0x16] sm:$0xff]
      %v1590 = vld [vmem:[%s261 + $0x26] sm:$0xff]
      %v1591 = vld [vmem:[%s261 + $0x36] sm:$0xff]
      %v1592 = vld [vmem:[%s261 + $0x46] sm:$0xff]
      %v1593 = vld [vmem:[%s261 + $0x56] sm:$0xff]
      %v1594 = vld [vmem:[%s261 + $0x66] sm:$0xff]
      %v1595 = vld [vmem:[%s261 + $0x76] sm:$0xff]
      %v1596 = vpack.c.bf16 %v1589, %v1588
      %v1597 = vpack.c.bf16 %v1591, %v1590
      %v1598 = vpack.c.bf16 %v1593, %v1592
      %v1599 = vpack.c.bf16 %v1595, %v1594
      %s1600 = scalar_lea.vmem [#allocation3], 96
      %v1601 = vld [vmem:[%s1600] sm:$0xff]
      %v1602 = vld [vmem:[%s1600 + $0x10] sm:$0xff]
      %v1603 = vld [vmem:[%s1600 + $0x20] sm:$0xff]
      %v1604 = vld [vmem:[%s1600 + $0x30] sm:$0xff]
      %v1605 = vld [vmem:[%s1600 + $0x40] sm:$0xff]
      %v1606 = vld [vmem:[%s1600 + $0x50] sm:$0xff]
      %v1607 = vld [vmem:[%s1600 + $0x60] sm:$0xff]
      %v1608 = vld [vmem:[%s1600 + $0x70] sm:$0xff]
      %v1609 = vpack.c.bf16 %v1602, %v1601
      %v1610 = vpack.c.bf16 %v1604, %v1603
      %v1611 = vpack.c.bf16 %v1606, %v1605
      %v1612 = vpack.c.bf16 %v1608, %v1607
      %v1613 = vld [vmem:[%s1600 + $0x3] sm:$0xff]
      %v1614 = vld [vmem:[%s1600 + $0x13] sm:$0xff]
      %v1615 = vld [vmem:[%s1600 + $0x23] sm:$0xff]
      %v1616 = vld [vmem:[%s1600 + $0x33] sm:$0xff]
      %v1617 = vld [vmem:[%s1600 + $0x43] sm:$0xff]
      %v1618 = vld [vmem:[%s1600 + $0x53] sm:$0xff]
      %v1619 = vld [vmem:[%s1600 + $0x63] sm:$0xff]
      %v1620 = vld [vmem:[%s1600 + $0x73] sm:$0xff]
      %v1621 = vpack.c.bf16 %v1614, %v1613
      %v1622 = vpack.c.bf16 %v1616, %v1615
      %v1623 = vpack.c.bf16 %v1618, %v1617
      %v1624 = vpack.c.bf16 %v1620, %v1619
      %v1625 = vld [vmem:[%s1600 + $0x6] sm:$0xff]
      %v1626 = vld [vmem:[%s1600 + $0x16] sm:$0xff]
      %v1627 = vld [vmem:[%s1600 + $0x26] sm:$0xff]
      %v1628 = vld [vmem:[%s1600 + $0x36] sm:$0xff]
      %v1629 = vld [vmem:[%s1600 + $0x46] sm:$0xff]
      %v1630 = vld [vmem:[%s1600 + $0x56] sm:$0xff]
      %v1631 = vld [vmem:[%s1600 + $0x66] sm:$0xff]
      %v1632 = vld [vmem:[%s1600 + $0x76] sm:$0xff]
      %v1633 = vpack.c.bf16 %v1626, %v1625
      %v1634 = vpack.c.bf16 %v1628, %v1627
      %v1635 = vpack.c.bf16 %v1630, %v1629
      %v1636 = vpack.c.bf16 %v1632, %v1631
      %v1637 = vld [vmem:[%s2] sm:$0xf]
      %v1638 = vld [vmem:[%s2 + $0x4] sm:$0xf]
      %v1639 = vld [vmem:[%s2 + $0x8] sm:$0xf]
      %v1640 = vld [vmem:[%s2 + $0xc] sm:$0xf]
      %v1641 = vld [vmem:[%s2 + $0x10] sm:$0xf]
      %v1642 = vld [vmem:[%s2 + $0x14] sm:$0xf]
      %v1643 = vld [vmem:[%s2 + $0x18] sm:$0xf]
      %v1644 = vld [vmem:[%s2 + $0x1c] sm:$0xf]
      %v1645 = vld [vmem:[%s2 + $0x20] sm:$0xf]
      %v1646 = vld [vmem:[%s2 + $0x24] sm:$0xf]
      %v1647 = vld [vmem:[%s2 + $0x28] sm:$0xf]
      %v1648 = vld [vmem:[%s2 + $0x2c] sm:$0xf]
      %v1649 = vld [vmem:[%s2 + $0x30] sm:$0xf]
      %v1650 = vld [vmem:[%s2 + $0x34] sm:$0xf]
      %v1651 = vld [vmem:[%s2 + $0x38] sm:$0xf]
      %v1652 = vld [vmem:[%s2 + $0x3c] sm:$0xf]
      %v1653 = vld [vmem:[%s2 + $0x40] sm:$0xf]
      %v1654 = vld [vmem:[%s2 + $0x44] sm:$0xf]
      %v1655 = vld [vmem:[%s2 + $0x48] sm:$0xf]
      %v1656 = vld [vmem:[%s2 + $0x4c] sm:$0xf]
      %v1657 = vld [vmem:[%s2 + $0x50] sm:$0xf]
      %v1658 = vld [vmem:[%s2 + $0x54] sm:$0xf]
      %v1659 = vld [vmem:[%s2 + $0x58] sm:$0xf]
      %v1660 = vld [vmem:[%s2 + $0x5c] sm:$0xf]
      %v1661 = vld [vmem:[%s2 + $0x60] sm:$0xf]
      %v1662 = vld [vmem:[%s2 + $0x64] sm:$0xf]
      %v1663 = vld [vmem:[%s2 + $0x68] sm:$0xf]
      %v1664 = vld [vmem:[%s2 + $0x6c] sm:$0xf]
      %v1665 = vld [vmem:[%s2 + $0x70] sm:$0xf]
      %v1666 = vld [vmem:[%s2 + $0x74] sm:$0xf]
      %v1667 = vld [vmem:[%s2 + $0x78] sm:$0xf]
      %v1668 = vld [vmem:[%s2 + $0x7c] sm:$0xf]
      %v1669 = vld [vmem:[%s2 + $0x80] sm:$0xf]
      %v1670 = vld [vmem:[%s2 + $0x84] sm:$0xf]
      %v1671 = vld [vmem:[%s2 + $0x88] sm:$0xf]
      %v1672 = vld [vmem:[%s2 + $0x8c] sm:$0xf]
      %v1673 = vld [vmem:[%s2 + $0x90] sm:$0xf]
      %v1674 = vld [vmem:[%s2 + $0x94] sm:$0xf]
      %v1675 = vld [vmem:[%s2 + $0x98] sm:$0xf]
      %v1676 = vld [vmem:[%s2 + $0x9c] sm:$0xf]
      %v1677 = vld [vmem:[%s2 + $0xa0] sm:$0xf]
      %v1678 = vld [vmem:[%s2 + $0xa4] sm:$0xf]
      %v1679 = vld [vmem:[%s2 + $0xa8] sm:$0xf]
      %v1680 = vld [vmem:[%s2 + $0xac] sm:$0xf]
      %v1681 = vld [vmem:[%s2 + $0xb0] sm:$0xf]
      %v1682 = vld [vmem:[%s2 + $0xb4] sm:$0xf]
      %v1683 = vld [vmem:[%s2 + $0xb8] sm:$0xf]
      %v1684 = vld [vmem:[%s2 + $0xbc] sm:$0xf]
      %v1685 = vld [vmem:[%s2 + $0xc0] sm:$0xf]
      %v1686 = vld [vmem:[%s2 + $0xc4] sm:$0xf]
      %v1687 = vld [vmem:[%s2 + $0xc8] sm:$0xf]
      %v1688 = vld [vmem:[%s2 + $0xcc] sm:$0xf]
      %v1689 = vld [vmem:[%s2 + $0xd0] sm:$0xf]
      %v1690 = vld [vmem:[%s2 + $0xd4] sm:$0xf]
      %v1691 = vld [vmem:[%s2 + $0xd8] sm:$0xf]
      %v1692 = vld [vmem:[%s2 + $0xdc] sm:$0xf]
      %v1693 = vld [vmem:[%s2 + $0xe0] sm:$0xf]
      %v1694 = vld [vmem:[%s2 + $0xe4] sm:$0xf]
      %v1695 = vld [vmem:[%s2 + $0xe8] sm:$0xf]
      %v1696 = vld [vmem:[%s2 + $0xec] sm:$0xf]
      %v1697 = vld [vmem:[%s2 + $0xf0] sm:$0xf]
      %v1698 = vld [vmem:[%s2 + $0xf4] sm:$0xf]
      %v1699 = vld [vmem:[%s2 + $0xf8] sm:$0xf]
      %v1700 = vld [vmem:[%s2 + $0xfc] sm:$0xf]
      %v1701 = vld [vmem:[%s2 + $0x100] sm:$0xf]
      %v1702 = vld [vmem:[%s2 + $0x104] sm:$0xf]
      %v1703 = vld [vmem:[%s2 + $0x108] sm:$0xf]
      %v1704 = vld [vmem:[%s2 + $0x10c] sm:$0xf]
      %v1705 = vld [vmem:[%s2 + $0x110] sm:$0xf]
      %v1706 = vld [vmem:[%s2 + $0x114] sm:$0xf]
      %v1707 = vld [vmem:[%s2 + $0x118] sm:$0xf]
      %v1708 = vld [vmem:[%s2 + $0x11c] sm:$0xf]
      %v1709 = vld [vmem:[%s2 + $0x120] sm:$0xf]
      %v1710 = vld [vmem:[%s2 + $0x124] sm:$0xf]
      %v1711 = vld [vmem:[%s2 + $0x128] sm:$0xf]
      %v1712 = vld [vmem:[%s2 + $0x12c] sm:$0xf]
      %v1713 = vld [vmem:[%s2 + $0x130] sm:$0xf]
      %v1714 = vld [vmem:[%s2 + $0x134] sm:$0xf]
      %v1715 = vld [vmem:[%s2 + $0x138] sm:$0xf]
      %v1716 = vld [vmem:[%s2 + $0x13c] sm:$0xf]
      %v1717 = vld [vmem:[%s2 + $0x140] sm:$0xf]
      %v1718 = vld [vmem:[%s2 + $0x144] sm:$0xf]
      %v1719 = vld [vmem:[%s2 + $0x148] sm:$0xf]
      %v1720 = vld [vmem:[%s2 + $0x14c] sm:$0xf]
      %v1721 = vld [vmem:[%s2 + $0x150] sm:$0xf]
      %v1722 = vld [vmem:[%s2 + $0x154] sm:$0xf]
      %v1723 = vld [vmem:[%s2 + $0x158] sm:$0xf]
      %v1724 = vld [vmem:[%s2 + $0x15c] sm:$0xf]
      %v1725 = vld [vmem:[%s2 + $0x160] sm:$0xf]
      %v1726 = vld [vmem:[%s2 + $0x164] sm:$0xf]
      %v1727 = vld [vmem:[%s2 + $0x168] sm:$0xf]
      %v1728 = vld [vmem:[%s2 + $0x16c] sm:$0xf]
      %v1729 = vld [vmem:[%s2 + $0x170] sm:$0xf]
      %v1730 = vld [vmem:[%s2 + $0x174] sm:$0xf]
      %v1731 = vld [vmem:[%s2 + $0x178] sm:$0xf]
      %v1732 = vld [vmem:[%s2 + $0x17c] sm:$0xf]
      %v1733 = vld [vmem:[%s2 + $0x180] sm:$0xf]
      %v1734 = vld [vmem:[%s2 + $0x184] sm:$0xf]
      %v1735 = vld [vmem:[%s2 + $0x188] sm:$0xf]
      %v1736 = vld [vmem:[%s2 + $0x18c] sm:$0xf]
      %v1737 = vld [vmem:[%s2 + $0x190] sm:$0xf]
      %v1738 = vld [vmem:[%s2 + $0x194] sm:$0xf]
      %v1739 = vld [vmem:[%s2 + $0x198] sm:$0xf]
      %v1740 = vld [vmem:[%s2 + $0x19c] sm:$0xf]
      %v1741 = vld [vmem:[%s2 + $0x1a0] sm:$0xf]
      %v1742 = vld [vmem:[%s2 + $0x1a4] sm:$0xf]
      %v1743 = vld [vmem:[%s2 + $0x1a8] sm:$0xf]
      %v1744 = vld [vmem:[%s2 + $0x1ac] sm:$0xf]
      %v1745 = vld [vmem:[%s2 + $0x1b0] sm:$0xf]
      %v1746 = vld [vmem:[%s2 + $0x1b4] sm:$0xf]
      %v1747 = vld [vmem:[%s2 + $0x1b8] sm:$0xf]
      %v1748 = vld [vmem:[%s2 + $0x1bc] sm:$0xf]
      %v1749 = vld [vmem:[%s2 + $0x1c0] sm:$0xf]
      %v1750 = vld [vmem:[%s2 + $0x1c4] sm:$0xf]
      %v1751 = vld [vmem:[%s2 + $0x1c8] sm:$0xf]
      %v1752 = vld [vmem:[%s2 + $0x1cc] sm:$0xf]
      %v1753 = vld [vmem:[%s2 + $0x1d0] sm:$0xf]
      %v1754 = vld [vmem:[%s2 + $0x1d4] sm:$0xf]
      %v1755 = vld [vmem:[%s2 + $0x1d8] sm:$0xf]
      %v1756 = vld [vmem:[%s2 + $0x1dc] sm:$0xf]
      %v1757 = vld [vmem:[%s2 + $0x1e0] sm:$0xf]
      %v1758 = vld [vmem:[%s2 + $0x1e4] sm:$0xf]
      %v1759 = vld [vmem:[%s2 + $0x1e8] sm:$0xf]
      %v1760 = vld [vmem:[%s2 + $0x1ec] sm:$0xf]
      %v1761 = vld [vmem:[%s2 + $0x1f0] sm:$0xf]
      %v1762 = vld [vmem:[%s2 + $0x1f4] sm:$0xf]
      %v1763 = vld [vmem:[%s2 + $0x1f8] sm:$0xf]
      %v1764 = vld [vmem:[%s2 + $0x1fc] sm:$0xf]
      %v1765 = vld [vmem:[%s2 + $0x200] sm:$0xf]
      %v1766 = vld [vmem:[%s2 + $0x204] sm:$0xf]
      %v1767 = vld [vmem:[%s2 + $0x208] sm:$0xf]
      %v1768 = vld [vmem:[%s2 + $0x20c] sm:$0xf]
      %v1769 = vld [vmem:[%s2 + $0x210] sm:$0xf]
      %v1770 = vld [vmem:[%s2 + $0x214] sm:$0xf]
      %v1771 = vld [vmem:[%s2 + $0x218] sm:$0xf]
      %v1772 = vld [vmem:[%s2 + $0x21c] sm:$0xf]
      %v1773 = vld [vmem:[%s2 + $0x220] sm:$0xf]
      %v1774 = vld [vmem:[%s2 + $0x224] sm:$0xf]
      %v1775 = vld [vmem:[%s2 + $0x228] sm:$0xf]
      %v1776 = vld [vmem:[%s2 + $0x22c] sm:$0xf]
      %v1777 = vld [vmem:[%s2 + $0x230] sm:$0xf]
      %v1778 = vld [vmem:[%s2 + $0x234] sm:$0xf]
      %v1779 = vld [vmem:[%s2 + $0x238] sm:$0xf]
      %v1780 = vld [vmem:[%s2 + $0x23c] sm:$0xf]
      %v1925 = vunpack.c.l.b16 %v1637
      %v1926 = vunpack.c.l.b16 %v1638
      %v1927 = vunpack.c.l.b16 %v1639
      %v1928 = vunpack.c.l.b16 %v1640
      %v1929 = vunpack.c.l.b16 %v1641
      %v1930 = vunpack.c.l.b16 %v1642
      %v1931 = vunpack.c.l.b16 %v1643
      %v1932 = vunpack.c.l.b16 %v1644
      %v1933 = vunpack.c.l.b16 %v1645
      %v1934 = vunpack.c.l.b16 %v1646
      %v1935 = vunpack.c.l.b16 %v1647
      %v1936 = vunpack.c.l.b16 %v1648
      %v1937 = vunpack.c.l.b16 %v1649
      %v1938 = vunpack.c.l.b16 %v1650
      %v1939 = vunpack.c.l.b16 %v1651
      %v1940 = vunpack.c.l.b16 %v1652
      %v1941 = vunpack.c.l.b16 %v1653
      %v1942 = vunpack.c.l.b16 %v1654
      %v1943 = vunpack.c.l.b16 %v1655
      %v1944 = vunpack.c.l.b16 %v1656
      %v1945 = vunpack.c.l.b16 %v1657
      %v1946 = vunpack.c.l.b16 %v1658
      %v1947 = vunpack.c.l.b16 %v1659
      %v1948 = vunpack.c.l.b16 %v1660
      %v1949 = vunpack.c.l.b16 %v1661
      %v1950 = vunpack.c.l.b16 %v1662
      %v1951 = vunpack.c.l.b16 %v1663
      %v1952 = vunpack.c.l.b16 %v1664
      %v1953 = vunpack.c.l.b16 %v1665
      %v1954 = vunpack.c.l.b16 %v1666
      %v1955 = vunpack.c.l.b16 %v1667
      %v1956 = vunpack.c.l.b16 %v1668
      %v1957 = vunpack.c.l.b16 %v1669
      %v1958 = vunpack.c.l.b16 %v1670
      %v1959 = vunpack.c.l.b16 %v1671
      %v1960 = vunpack.c.l.b16 %v1672
      %v1961 = vunpack.c.l.b16 %v1673
      %v1962 = vunpack.c.l.b16 %v1674
      %v1963 = vunpack.c.l.b16 %v1675
      %v1964 = vunpack.c.l.b16 %v1676
      %v1965 = vunpack.c.l.b16 %v1677
      %v1966 = vunpack.c.l.b16 %v1678
      %v1967 = vunpack.c.l.b16 %v1679
      %v1968 = vunpack.c.l.b16 %v1680
      %v1969 = vunpack.c.l.b16 %v1681
      %v1970 = vunpack.c.l.b16 %v1682
      %v1971 = vunpack.c.l.b16 %v1683
      %v1972 = vunpack.c.l.b16 %v1684
      %v1973 = vunpack.c.l.b16 %v1685
      %v1974 = vunpack.c.l.b16 %v1686
      %v1975 = vunpack.c.l.b16 %v1687
      %v1976 = vunpack.c.l.b16 %v1688
      %v1977 = vunpack.c.l.b16 %v1689
      %v1978 = vunpack.c.l.b16 %v1690
      %v1979 = vunpack.c.l.b16 %v1691
      %v1980 = vunpack.c.l.b16 %v1692
      %v1981 = vunpack.c.l.b16 %v1693
      %v1982 = vunpack.c.l.b16 %v1694
      %v1983 = vunpack.c.l.b16 %v1695
      %v1984 = vunpack.c.l.b16 %v1696
      %v1985 = vunpack.c.l.b16 %v1697
      %v1986 = vunpack.c.l.b16 %v1698
      %v1987 = vunpack.c.l.b16 %v1699
      %v1988 = vunpack.c.l.b16 %v1700
      %v1989 = vunpack.c.l.b16 %v1701
      %v1990 = vunpack.c.l.b16 %v1702
      %v1991 = vunpack.c.l.b16 %v1703
      %v1992 = vunpack.c.l.b16 %v1704
      %v1993 = vunpack.c.l.b16 %v1705
      %v1994 = vunpack.c.l.b16 %v1706
      %v1995 = vunpack.c.l.b16 %v1707
      %v1996 = vunpack.c.l.b16 %v1708
      %v1997 = vunpack.c.l.b16 %v1709
      %v1998 = vunpack.c.l.b16 %v1710
      %v1999 = vunpack.c.l.b16 %v1711
      %v2000 = vunpack.c.l.b16 %v1712
      %v2001 = vunpack.c.l.b16 %v1713
      %v2002 = vunpack.c.l.b16 %v1714
      %v2003 = vunpack.c.l.b16 %v1715
      %v2004 = vunpack.c.l.b16 %v1716
      %v2005 = vunpack.c.l.b16 %v1717
      %v2006 = vunpack.c.l.b16 %v1718
      %v2007 = vunpack.c.l.b16 %v1719
      %v2008 = vunpack.c.l.b16 %v1720
      %v2009 = vunpack.c.l.b16 %v1721
      %v2010 = vunpack.c.l.b16 %v1722
      %v2011 = vunpack.c.l.b16 %v1723
      %v2012 = vunpack.c.l.b16 %v1724
      %v2013 = vunpack.c.l.b16 %v1725
      %v2014 = vunpack.c.l.b16 %v1726
      %v2015 = vunpack.c.l.b16 %v1727
      %v2016 = vunpack.c.l.b16 %v1728
      %v2017 = vunpack.c.l.b16 %v1729
      %v2018 = vunpack.c.l.b16 %v1730
      %v2019 = vunpack.c.l.b16 %v1731
      %v2020 = vunpack.c.l.b16 %v1732
      %v2021 = vunpack.c.l.b16 %v1733
      %v2022 = vunpack.c.l.b16 %v1734
      %v2023 = vunpack.c.l.b16 %v1735
      %v2024 = vunpack.c.l.b16 %v1736
      %v2025 = vunpack.c.l.b16 %v1737
      %v2026 = vunpack.c.l.b16 %v1738
      %v2027 = vunpack.c.l.b16 %v1739
      %v2028 = vunpack.c.l.b16 %v1740
      %v2029 = vunpack.c.l.b16 %v1741
      %v2030 = vunpack.c.l.b16 %v1742
      %v2031 = vunpack.c.l.b16 %v1743
      %v2032 = vunpack.c.l.b16 %v1744
      %v2033 = vunpack.c.l.b16 %v1745
      %v2034 = vunpack.c.l.b16 %v1746
      %v2035 = vunpack.c.l.b16 %v1747
      %v2036 = vunpack.c.l.b16 %v1748
      %v2037 = vunpack.c.l.b16 %v1749
      %v2038 = vunpack.c.l.b16 %v1750
      %v2039 = vunpack.c.l.b16 %v1751
      %v2040 = vunpack.c.l.b16 %v1752
      %v2041 = vunpack.c.l.b16 %v1753
      %v2042 = vunpack.c.l.b16 %v1754
      %v2043 = vunpack.c.l.b16 %v1755
      %v2044 = vunpack.c.l.b16 %v1756
      %v2045 = vunpack.c.l.b16 %v1757
      %v2046 = vunpack.c.l.b16 %v1758
      %v2047 = vunpack.c.l.b16 %v1759
      %v2048 = vunpack.c.l.b16 %v1760
      %v2049 = vunpack.c.l.b16 %v1761
      %v2050 = vunpack.c.l.b16 %v1762
      %v2051 = vunpack.c.l.b16 %v1763
      %v2052 = vunpack.c.l.b16 %v1764
      %v2053 = vunpack.c.l.b16 %v1765
      %v2054 = vunpack.c.l.b16 %v1766
      %v2055 = vunpack.c.l.b16 %v1767
      %v2056 = vunpack.c.l.b16 %v1768
      %v2057 = vunpack.c.l.b16 %v1769
      %v2058 = vunpack.c.l.b16 %v1770
      %v2059 = vunpack.c.l.b16 %v1771
      %v2060 = vunpack.c.l.b16 %v1772
      %v2061 = vunpack.c.l.b16 %v1773
      %v2062 = vunpack.c.l.b16 %v1774
      %v2063 = vunpack.c.l.b16 %v1775
      %v2064 = vunpack.c.l.b16 %v1776
      %v2065 = vunpack.c.l.b16 %v1777
      %v2066 = vunpack.c.l.b16 %v1778
      %v2067 = vunpack.c.l.b16 %v1779
      %v2068 = vunpack.c.l.b16 %v1780
      %v2069 = vpack.c.b16 %v1926, %v1925
      %v2070 = vpack.c.b16 %v1928, %v1927
      %v2071 = vpack.c.b16 %v1930, %v1929
      %v2072 = vpack.c.b16 %v1932, %v1931
      %v2073 = vpack.c.b16 %v1934, %v1933
      %v2074 = vpack.c.b16 %v1936, %v1935
      %v2075 = vpack.c.b16 %v1938, %v1937
      %v2076 = vpack.c.b16 %v1940, %v1939
      %v2077 = vpack.c.b16 %v1942, %v1941
      %v2078 = vpack.c.b16 %v1944, %v1943
      %v2079 = vpack.c.b16 %v1946, %v1945
      %v2080 = vpack.c.b16 %v1948, %v1947
      %v2081 = vpack.c.b16 %v1950, %v1949
      %v2082 = vpack.c.b16 %v1952, %v1951
      %v2083 = vpack.c.b16 %v1954, %v1953
      %v2084 = vpack.c.b16 %v1956, %v1955
      %v2085 = vpack.c.b16 %v1958, %v1957
      %v2086 = vpack.c.b16 %v1960, %v1959
      %v2087 = vpack.c.b16 %v1962, %v1961
      %v2088 = vpack.c.b16 %v1964, %v1963
      %v2089 = vpack.c.b16 %v1966, %v1965
      %v2090 = vpack.c.b16 %v1968, %v1967
      %v2091 = vpack.c.b16 %v1970, %v1969
      %v2092 = vpack.c.b16 %v1972, %v1971
      %v2093 = vpack.c.b16 %v1974, %v1973
      %v2094 = vpack.c.b16 %v1976, %v1975
      %v2095 = vpack.c.b16 %v1978, %v1977
      %v2096 = vpack.c.b16 %v1980, %v1979
      %v2097 = vpack.c.b16 %v1982, %v1981
      %v2098 = vpack.c.b16 %v1984, %v1983
      %v2099 = vpack.c.b16 %v1986, %v1985
      %v2100 = vpack.c.b16 %v1988, %v1987
      %v2101 = vpack.c.b16 %v1990, %v1989
      %v2102 = vpack.c.b16 %v1992, %v1991
      %v2103 = vpack.c.b16 %v1994, %v1993
      %v2104 = vpack.c.b16 %v1996, %v1995
      %v2105 = vpack.c.b16 %v1998, %v1997
      %v2106 = vpack.c.b16 %v2000, %v1999
      %v2107 = vpack.c.b16 %v2002, %v2001
      %v2108 = vpack.c.b16 %v2004, %v2003
      %v2109 = vpack.c.b16 %v2006, %v2005
      %v2110 = vpack.c.b16 %v2008, %v2007
      %v2111 = vpack.c.b16 %v2010, %v2009
      %v2112 = vpack.c.b16 %v2012, %v2011
      %v2113 = vpack.c.b16 %v2014, %v2013
      %v2114 = vpack.c.b16 %v2016, %v2015
      %v2115 = vpack.c.b16 %v2018, %v2017
      %v2116 = vpack.c.b16 %v2020, %v2019
      %v2117 = vpack.c.b16 %v2022, %v2021
      %v2118 = vpack.c.b16 %v2024, %v2023
      %v2119 = vpack.c.b16 %v2026, %v2025
      %v2120 = vpack.c.b16 %v2028, %v2027
      %v2121 = vpack.c.b16 %v2030, %v2029
      %v2122 = vpack.c.b16 %v2032, %v2031
      %v2123 = vpack.c.b16 %v2034, %v2033
      %v2124 = vpack.c.b16 %v2036, %v2035
      %v2125 = vpack.c.b16 %v2038, %v2037
      %v2126 = vpack.c.b16 %v2040, %v2039
      %v2127 = vpack.c.b16 %v2042, %v2041
      %v2128 = vpack.c.b16 %v2044, %v2043
      %v2129 = vpack.c.b16 %v2046, %v2045
      %v2130 = vpack.c.b16 %v2048, %v2047
      %v2131 = vpack.c.b16 %v2050, %v2049
      %v2132 = vpack.c.b16 %v2052, %v2051
      %v2133 = vpack.c.b16 %v2054, %v2053
      %v2134 = vpack.c.b16 %v2056, %v2055
      %v2135 = vpack.c.b16 %v2058, %v2057
      %v2136 = vpack.c.b16 %v2060, %v2059
      %v2137 = vpack.c.b16 %v2062, %v2061
      %v2138 = vpack.c.b16 %v2064, %v2063
      %v2139 = vpack.c.b16 %v2066, %v2065
      %v2140 = vpack.c.b16 %v2068, %v2067
      %2213 = vmatprep.subr.bf16.mxu0 0
      %2214 = vmatpush1.bf16.msra.mxu0 %v2069
      %2215 = vmatprep.subr.bf16.mxu0 0
      %2216 = vmatpush1.bf16.msra.mxu0 %v2070
      %2217 = vmatprep.subr.bf16.mxu0 0
      %2218 = vmatpush1.bf16.msra.mxu0 %v2071
      %2219 = vmatprep.subr.bf16.mxu0 0
      %2220 = vmatpush1.bf16.msra.mxu0 %v2072
      %2221 = vmatprep.subr.bf16.mxu0 0
      %2222 = vmatpush1.bf16.msra.mxu0 %v2073
      %2223 = vmatprep.subr.bf16.mxu0 0
      %2224 = vmatpush1.bf16.msra.mxu0 %v2074
      %2225 = vmatprep.subr.bf16.mxu0 0
      %2226 = vmatpush1.bf16.msra.mxu0 %v2075
      %2227 = vmatprep.subr.bf16.mxu0 0
      %2228 = vmatpush1.bf16.msra.mxu0 %v2076
      %2229 = vmatprep.subr.bf16.mxu0 0
      %2230 = vmatpush1.bf16.msra.mxu0 %v2077
      %2231 = vmatprep.subr.bf16.mxu0 0
      %2232 = vmatpush1.bf16.msra.mxu0 %v2078
      %2233 = vmatprep.subr.bf16.mxu0 0
      %2234 = vmatpush1.bf16.msra.mxu0 %v2079
      %2235 = vmatprep.subr.bf16.mxu0 0
      %2236 = vmatpush1.bf16.msra.mxu0 %v2080
      %2237 = vmatprep.subr.bf16.mxu0 0
      %2238 = vmatpush1.bf16.msra.mxu0 %v2081
      %2239 = vmatprep.subr.bf16.mxu0 0
      %2240 = vmatpush1.bf16.msra.mxu0 %v2082
      %2241 = vmatprep.subr.bf16.mxu0 0
      %2242 = vmatpush1.bf16.msra.mxu0 %v2083
      %2243 = vmatprep.subr.bf16.mxu0 0
      %2244 = vmatpush1.bf16.msra.mxu0 %v2084
      %2245 = vmatprep.mubr.bf16.mxu0 %v1548
      %2246 = vmatmul.mubr.bf16.gmra.mrb[0].mxu0 %v1536
      %v2247 = vpop.f32.mrb[0].mxu0
      %v2248 = vadd.f32 0.0, %v2247
      %v2249 = vpop.f32.mrb[0].mxu0
      %v2250 = vpop.f32.mrb[0].mxu0
      %v2251 = vadd.f32 0.0, %v2250
      %v2252 = vpop.f32.mrb[0].mxu0
      %2253 = vmatprep.mubr.bf16.mxu0 %v1549
      %2254 = vmatmul.mubr.bf16.gmra.mrb[0].mxu0 %v1537
      %v2255 = vpop.f32.mrb[0].mxu0
      %v2256 = vadd.f32 0.0, %v2255
      %v2257 = vpop.f32.mrb[0].mxu0
      %v2258 = vpop.f32.mrb[0].mxu0
      %v2259 = vadd.f32 0.0, %v2258
      %v2260 = vpop.f32.mrb[0].mxu0
      %2261 = vmatprep.mubr.bf16.mxu0 %v1550
      %2262 = vmatmul.mubr.bf16.gmra.mrb[0].mxu0 %v1538
      %v2263 = vpop.f32.mrb[0].mxu0
      %v2264 = vadd.f32 0.0, %v2263
      %v2265 = vpop.f32.mrb[0].mxu0
      %v2266 = vpop.f32.mrb[0].mxu0
      %v2267 = vadd.f32 0.0, %v2266
      %v2268 = vpop.f32.mrb[0].mxu0
      %2269 = vmatprep.mubr.bf16.mxu0 %v1551
      %2270 = vmatmul.mubr.bf16.gmra.mrb[0].mxu0 %v1539
      %v2271 = vpop.f32.mrb[0].mxu0
      %v2272 = vadd.f32 0.0, %v2271
      %v2273 = vpop.f32.mrb[0].mxu0
      %v2274 = vpop.f32.mrb[0].mxu0
      %v2275 = vadd.f32 0.0, %v2274
      %v2276 = vpop.f32.mrb[0].mxu0
      %2277 = vdwg.mxu0
      %2278 = vmatprep.subr.bf16.mxu0 0
      %2279 = vmatpush1.bf16.msra.mxu0 %v2085
      %2280 = vmatprep.subr.bf16.mxu0 0
      %2281 = vmatpush1.bf16.msra.mxu0 %v2086
      %2282 = vmatprep.subr.bf16.mxu0 0
      %2283 = vmatpush1.bf16.msra.mxu0 %v2087
      %2284 = vmatprep.subr.bf16.mxu0 0
      %2285 = vmatpush1.bf16.msra.mxu0 %v2088
      %2286 = vmatprep.subr.bf16.mxu0 0
      %2287 = vmatpush1.bf16.msra.mxu0 %v2089
      %2288 = vmatprep.subr.bf16.mxu0 0
      %2289 = vmatpush1.bf16.msra.mxu0 %v2090
      %2290 = vmatprep.subr.bf16.mxu0 0
      %2291 = vmatpush1.bf16.msra.mxu0 %v2091
      %2292 = vmatprep.subr.bf16.mxu0 0
      %2293 = vmatpush1.bf16.msra.mxu0 %v2092
      %2294 = vmatprep.subr.bf16.mxu0 0
      %2295 = vmatpush1.bf16.msra.mxu0 %v2093
      %2296 = vmatprep.subr.bf16.mxu0 0
      %2297 = vmatpush1.bf16.msra.mxu0 %v2094
      %2298 = vmatprep.subr.bf16.mxu0 0
      %2299 = vmatpush1.bf16.msra.mxu0 %v2095
      %2300 = vmatprep.subr.bf16.mxu0 0
      %2301 = vmatpush1.bf16.msra.mxu0 %v2096
      %2302 = vmatprep.subr.bf16.mxu0 0
      %2303 = vmatpush1.bf16.msra.mxu0 %v2097
      %2304 = vmatprep.subr.bf16.mxu0 0
      %2305 = vmatpush1.bf16.msra.mxu0 %v2098
      %2306 = vmatprep.subr.bf16.mxu0 0
      %2307 = vmatpush1.bf16.msra.mxu0 %v2099
      %2308 = vmatprep.subr.bf16.mxu0 0
      %2309 = vmatpush1.bf16.msra.mxu0 %v2100
      %2310 = vmatprep.mubr.bf16.mxu0 %v1572
      %2311 = vmatmul.mubr.bf16.gmra.mrb[0].mxu0 %v1560
      %v2312 = vpop.f32.mrb[0].mxu0
      %v2313 = vadd.f32 %v2248, %v2312
      %v2314 = vpop.f32.mrb[0].mxu0
      %v2315 = vpop.f32.mrb[0].mxu0
      %v2316 = vadd.f32 %v2251, %v2315
      %v2317 = vpop.f32.mrb[0].mxu0
      %2318 = vmatprep.mubr.bf16.mxu0 %v1573
      %2319 = vmatmul.mubr.bf16.gmra.mrb[0].mxu0 %v1561
      %v2320 = vpop.f32.mrb[0].mxu0
      %v2321 = vadd.f32 %v2256, %v2320
      %v2322 = vpop.f32.mrb[0].mxu0
      %v2323 = vpop.f32.mrb[0].mxu0
      %v2324 = vadd.f32 %v2259, %v2323
      %v2325 = vpop.f32.mrb[0].mxu0
      %2326 = vmatprep.mubr.bf16.mxu0 %v1574
      %2327 = vmatmul.mubr.bf16.gmra.mrb[0].mxu0 %v1562
      %v2328 = vpop.f32.mrb[0].mxu0
      %v2329 = vadd.f32 %v2264, %v2328
      %v2330 = vpop.f32.mrb[0].mxu0
      %v2331 = vpop.f32.mrb[0].mxu0
      %v2332 = vadd.f32 %v2267, %v2331
      %v2333 = vpop.f32.mrb[0].mxu0
      %2334 = vmatprep.mubr.bf16.mxu0 %v1575
      %2335 = vmatmul.mubr.bf16.gmra.mrb[0].mxu0 %v1563
      %v2336 = vpop.f32.mrb[0].mxu0
      %v2337 = vadd.f32 %v2272, %v2336
      %v2338 = vpop.f32.mrb[0].mxu0
      %v2339 = vpop.f32.mrb[0].mxu0
      %v2340 = vadd.f32 %v2275, %v2339
      %v2341 = vpop.f32.mrb[0].mxu0
      %2342 = vdwg.mxu0
      %2343 = vmatprep.subr.bf16.mxu0 0
      %2344 = vmatpush1.bf16.msra.mxu0 %v2101
      %2345 = vmatprep.subr.bf16.mxu0 0
      %2346 = vmatpush1.bf16.msra.mxu0 %v2102
      %2347 = vmatprep.subr.bf16.mxu0 0
      %2348 = vmatpush1.bf16.msra.mxu0 %v2103
      %2349 = vmatprep.subr.bf16.mxu0 0
      %2350 = vmatpush1.bf16.msra.mxu0 %v2104
      %2351 = vmatprep.subr.bf16.mxu0 0
      %2352 = vmatpush1.bf16.msra.mxu0 %v2105
      %2353 = vmatprep.subr.bf16.mxu0 0
      %2354 = vmatpush1.bf16.msra.mxu0 %v2106
      %2355 = vmatprep.subr.bf16.mxu0 0
      %2356 = vmatpush1.bf16.msra.mxu0 %v2107
      %2357 = vmatprep.subr.bf16.mxu0 0
      %2358 = vmatpush1.bf16.msra.mxu0 %v2108
      %2359 = vmatprep.subr.bf16.mxu0 0
      %2360 = vmatpush1.bf16.msra.mxu0 %v2109
      %2361 = vmatprep.subr.bf16.mxu0 0
      %2362 = vmatpush1.bf16.msra.mxu0 %v2110
      %2363 = vmatprep.subr.bf16.mxu0 0
      %2364 = vmatpush1.bf16.msra.mxu0 %v2111
      %2365 = vmatprep.subr.bf16.mxu0 0
      %2366 = vmatpush1.bf16.msra.mxu0 %v2112
      %2367 = vmatprep.subr.bf16.mxu0 0
      %2368 = vmatpush1.bf16.msra.mxu0 %v2113
      %2369 = vmatprep.subr.bf16.mxu0 0
      %2370 = vmatpush1.bf16.msra.mxu0 %v2114
      %2371 = vmatprep.subr.bf16.mxu0 0
      %2372 = vmatpush1.bf16.msra.mxu0 %v2115
      %2373 = vmatprep.subr.bf16.mxu0 0
      %2374 = vmatpush1.bf16.msra.mxu0 %v2116
      %2375 = vmatprep.mubr.bf16.mxu0 %v1596
      %2376 = vmatmul.mubr.bf16.gmra.mrb[0].mxu0 %v1584
      %v2377 = vpop.f32.mrb[0].mxu0
      %v2378 = vadd.f32 %v2313, %v2377
      %v2379 = vpop.f32.mrb[0].mxu0
      %v2380 = vpop.f32.mrb[0].mxu0
      %v2381 = vadd.f32 %v2316, %v2380
      %v2382 = vpop.f32.mrb[0].mxu0
      %2383 = vmatprep.mubr.bf16.mxu0 %v1597
      %2384 = vmatmul.mubr.bf16.gmra.mrb[0].mxu0 %v1585
      %v2385 = vpop.f32.mrb[0].mxu0
      %v2386 = vadd.f32 %v2321, %v2385
      %v2387 = vpop.f32.mrb[0].mxu0
      %v2388 = vpop.f32.mrb[0].mxu0
      %v2389 = vadd.f32 %v2324, %v2388
      %v2390 = vpop.f32.mrb[0].mxu0
      %2391 = vmatprep.mubr.bf16.mxu0 %v1598
      %2392 = vmatmul.mubr.bf16.gmra.mrb[0].mxu0 %v1586
      %v2393 = vpop.f32.mrb[0].mxu0
      %v2394 = vadd.f32 %v2329, %v2393
      %v2395 = vpop.f32.mrb[0].mxu0
      %v2396 = vpop.f32.mrb[0].mxu0
      %v2397 = vadd.f32 %v2332, %v2396
      %v2398 = vpop.f32.mrb[0].mxu0
      %2399 = vmatprep.mubr.bf16.mxu0 %v1599
      %2400 = vmatmul.mubr.bf16.gmra.mrb[0].mxu0 %v1587
      %v2401 = vpop.f32.mrb[0].mxu0
      %v2402 = vadd.f32 %v2337, %v2401
      %v2403 = vpop.f32.mrb[0].mxu0
      %v2404 = vpop.f32.mrb[0].mxu0
      %v2405 = vadd.f32 %v2340, %v2404
      %v2406 = vpop.f32.mrb[0].mxu0
      %2407 = vdwg.mxu0
      %2408 = vmatprep.subr.bf16.mxu0 0
      %2409 = vmatpush1.bf16.msra.mxu0 %v2117
      %2410 = vmatprep.subr.bf16.mxu0 0
      %2411 = vmatpush1.bf16.msra.mxu0 %v2118
      %2412 = vmatprep.subr.bf16.mxu0 0
      %2413 = vmatpush1.bf16.msra.mxu0 %v2119
      %2414 = vmatprep.subr.bf16.mxu0 0
      %2415 = vmatpush1.bf16.msra.mxu0 %v2120
      %2416 = vmatprep.subr.bf16.mxu0 0
      %2417 = vmatpush1.bf16.msra.mxu0 %v2121
      %2418 = vmatprep.subr.bf16.mxu0 0
      %2419 = vmatpush1.bf16.msra.mxu0 %v2122
      %2420 = vmatprep.subr.bf16.mxu0 0
      %2421 = vmatpush1.bf16.msra.mxu0 %v2123
      %2422 = vmatprep.subr.bf16.mxu0 0
      %2423 = vmatpush1.bf16.msra.mxu0 %v2124
      %2424 = vmatprep.subr.bf16.mxu0 0
      %2425 = vmatpush1.bf16.msra.mxu0 %v2125
      %2426 = vmatprep.subr.bf16.mxu0 0
      %2427 = vmatpush1.bf16.msra.mxu0 %v2126
      %2428 = vmatprep.subr.bf16.mxu0 0
      %2429 = vmatpush1.bf16.msra.mxu0 %v2127
      %2430 = vmatprep.subr.bf16.mxu0 0
      %2431 = vmatpush1.bf16.msra.mxu0 %v2128
      %2432 = vmatprep.subr.bf16.mxu0 0
      %2433 = vmatpush1.bf16.msra.mxu0 %v2129
      %2434 = vmatprep.subr.bf16.mxu0 0
      %2435 = vmatpush1.bf16.msra.mxu0 %v2130
      %2436 = vmatprep.subr.bf16.mxu0 0
      %2437 = vmatpush1.bf16.msra.mxu0 %v2131
      %2438 = vmatprep.subr.bf16.mxu0 0
      %2439 = vmatpush1.bf16.msra.mxu0 %v2132
      %2440 = vmatprep.mubr.bf16.mxu0 %v1621
      %2441 = vmatmul.mubr.bf16.gmra.mrb[0].mxu0 %v1609
      %v2442 = vpop.f32.mrb[0].mxu0
      %v2443 = vadd.f32 %v2378, %v2442
      %v2444 = vpop.f32.mrb[0].mxu0
      %v2445 = vpop.f32.mrb[0].mxu0
      %v2446 = vadd.f32 %v2381, %v2445
      %v2447 = vpop.f32.mrb[0].mxu0
      %2448 = vmatprep.mubr.bf16.mxu0 %v1622
      %2449 = vmatmul.mubr.bf16.gmra.mrb[0].mxu0 %v1610
      %v2450 = vpop.f32.mrb[0].mxu0
      %v2451 = vadd.f32 %v2386, %v2450
      %v2452 = vpop.f32.mrb[0].mxu0
      %v2453 = vpop.f32.mrb[0].mxu0
      %v2454 = vadd.f32 %v2389, %v2453
      %v2455 = vpop.f32.mrb[0].mxu0
      %2456 = vmatprep.mubr.bf16.mxu0 %v1623
      %2457 = vmatmul.mubr.bf16.gmra.mrb[0].mxu0 %v1611
      %v2458 = vpop.f32.mrb[0].mxu0
      %v2459 = vadd.f32 %v2394, %v2458
      %v2460 = vpop.f32.mrb[0].mxu0
      %v2461 = vpop.f32.mrb[0].mxu0
      %v2462 = vadd.f32 %v2397, %v2461
      %v2463 = vpop.f32.mrb[0].mxu0
      %2464 = vmatprep.mubr.bf16.mxu0 %v1624
      %2465 = vmatmul.mubr.bf16.gmra.mrb[0].mxu0 %v1612
      %v2466 = vpop.f32.mrb[0].mxu0
      %v2467 = vadd.f32 %v2402, %v2466
      %v2468 = vpop.f32.mrb[0].mxu0
      %v2469 = vpop.f32.mrb[0].mxu0
      %v2470 = vadd.f32 %v2405, %v2469
      %v2471 = vpop.f32.mrb[0].mxu0
      %2472 = vdwg.mxu0
      %2473 = vmatprep.subr.bf16.mxu0 0
      %2474 = vmatpush1.bf16.msra.mxu0 %v2133
      %2475 = vmatprep.subr.bf16.mxu0 0
      %2476 = vmatpush1.bf16.msra.mxu0 %v2134
      %2477 = vmatprep.subr.bf16.mxu0 0
      %2478 = vmatpush1.bf16.msra.mxu0 %v2135
      %2479 = vmatprep.subr.bf16.mxu0 0
      %2480 = vmatpush1.bf16.msra.mxu0 %v2136
      %2481 = vmatprep.subr.bf16.mxu0 0
      %2482 = vmatpush1.bf16.msra.mxu0 %v2137
      %2483 = vmatprep.subr.bf16.mxu0 0
      %2484 = vmatpush1.bf16.msra.mxu0 %v2138
      %2485 = vmatprep.subr.bf16.mxu0 0
      %2486 = vmatpush1.bf16.msra.mxu0 %v2139
      %2487 = vmatprep.subr.bf16.mxu0 0
      %2488 = vmatpush1.bf16.msra.mxu0 %v2140
      %2489 = vmatprep.subr.bf16.mxu0 0
      %2490 = vmatpush1.bf16.msra.mxu0 0
      %2491 = vmatprep.subr.bf16.mxu0 0
      %2492 = vmatpush1.bf16.msra.mxu0 0
      %2493 = vmatprep.subr.bf16.mxu0 0
      %2494 = vmatpush1.bf16.msra.mxu0 0
      %2495 = vmatprep.subr.bf16.mxu0 0
      %2496 = vmatpush1.bf16.msra.mxu0 0
      %2497 = vmatprep.subr.bf16.mxu0 0
      %2498 = vmatpush1.bf16.msra.mxu0 0
      %2499 = vmatprep.subr.bf16.mxu0 0
      %2500 = vmatpush1.bf16.msra.mxu0 0
      %2501 = vmatprep.subr.bf16.mxu0 0
      %2502 = vmatpush1.bf16.msra.mxu0 0
      %2503 = vmatprep.subr.bf16.mxu0 0
      %2504 = vmatpush1.bf16.msra.mxu0 0
      %2505 = vmatprep.mubr.bf16.mxu0 0
      %2506 = vmatmul.mubr.bf16.gmra.mrb[0].mxu0 %v1633
      %v2507 = vpop.f32.mrb[0].mxu0
      %v2508 = vadd.f32 %v2443, %v2507
      %v2509 = vpop.f32.mrb[0].mxu0
      %v2510 = vpop.f32.mrb[0].mxu0
      %v2511 = vadd.f32 %v2446, %v2510
      %v2512 = vpop.f32.mrb[0].mxu0
      %2513 = vmatprep.mubr.bf16.mxu0 0
      %2514 = vmatmul.mubr.bf16.gmra.mrb[0].mxu0 %v1634
      %v2515 = vpop.f32.mrb[0].mxu0
      %v2516 = vadd.f32 %v2451, %v2515
      %v2517 = vpop.f32.mrb[0].mxu0
      %v2518 = vpop.f32.mrb[0].mxu0
      %v2519 = vadd.f32 %v2454, %v2518
      %v2520 = vpop.f32.mrb[0].mxu0
      %2521 = vmatprep.mubr.bf16.mxu0 0
      %2522 = vmatmul.mubr.bf16.gmra.mrb[0].mxu0 %v1635
      %v2523 = vpop.f32.mrb[0].mxu0
      %v2524 = vadd.f32 %v2459, %v2523
      %v2525 = vpop.f32.mrb[0].mxu0
      %v2526 = vpop.f32.mrb[0].mxu0
      %v2527 = vadd.f32 %v2462, %v2526
      %v2528 = vpop.f32.mrb[0].mxu0
      %2529 = vmatprep.mubr.bf16.mxu0 0
      %2530 = vmatmul.mubr.bf16.gmra.mrb[0].mxu0 %v1636
      %v2531 = vpop.f32.mrb[0].mxu0
      %v2532 = vadd.f32 %v2467, %v2531
      %v2533 = vpop.f32.mrb[0].mxu0
      %v2534 = vpop.f32.mrb[0].mxu0
      %v2535 = vadd.f32 %v2470, %v2534
      %v2536 = vpop.f32.mrb[0].mxu0
      %2537 = vdwg.mxu0
      %v2538 = vsel %vm1321, %v2508, 0.0
      %v2539 = vsel %vm1321, %v2511, 0.0
      %v2540 = vadd.f32 %v2538, %v2539
      %v2541 = vsel %vm1321, %v2516, 0.0
      %v2542 = vadd.f32 %v2540, %v2541
      %v2543 = vsel %vm1321, %v2519, 0.0
      %v2544 = vadd.f32 %v2542, %v2543
      %v2545 = vsel %vm1321, %v2524, 0.0
      %v2546 = vadd.f32 %v2544, %v2545
      %v2547 = vsel %vm1321, %v2527, 0.0
      %v2548 = vadd.f32 %v2546, %v2547
      %v2549 = vsel %vm1321, %v2532, 0.0
      %v2550 = vadd.f32 %v2548, %v2549
      %v2551 = vsel %vm1321, %v2535, 0.0
      %v2552 = vadd.f32 %v2550, %v2551
      %v2553 = vrot.slane %v2552, 4
      %v2554 = vadd.f32 %v2552, %v2553
      %v2555 = vrot.slane %v2554, 2
      %v2556 = vadd.f32 %v2554, %v2555
      %v2557 = vrot.slane %v2556, 1
      %v2558 = vadd.f32 %v2556, %v2557
      %v2559 = vmul.f32 %v2508, %v2508
      %v2560 = vmul.f32 %v2511, %v2511
      %v2561 = vmul.f32 %v2516, %v2516
      %v2562 = vmul.f32 %v2519, %v2519
      %v2563 = vmul.f32 %v2524, %v2524
      %v2564 = vmul.f32 %v2527, %v2527
      %v2565 = vmul.f32 %v2532, %v2532
      %v2566 = vmul.f32 %v2535, %v2535
      %v2567 = vsel %vm1321, %v2559, 0.0
      %v2568 = vsel %vm1321, %v2560, 0.0
      %v2569 = vadd.f32 %v2567, %v2568
      %v2570 = vsel %vm1321, %v2561, 0.0
      %v2571 = vadd.f32 %v2569, %v2570
      %v2572 = vsel %vm1321, %v2562, 0.0
      %v2573 = vadd.f32 %v2571, %v2572
      %v2574 = vsel %vm1321, %v2563, 0.0
      %v2575 = vadd.f32 %v2573, %v2574
      %v2576 = vsel %vm1321, %v2564, 0.0
      %v2577 = vadd.f32 %v2575, %v2576
      %v2578 = vsel %vm1321, %v2565, 0.0
      %v2579 = vadd.f32 %v2577, %v2578
      %v2580 = vsel %vm1321, %v2566, 0.0
      %v2581 = vadd.f32 %v2579, %v2580
      %v2582 = vrot.slane %v2581, 4
      %v2583 = vadd.f32 %v2581, %v2582
      %v2584 = vrot.slane %v2583, 2
      %v2585 = vadd.f32 %v2583, %v2584
      %v2586 = vrot.slane %v2585, 1
      %v2587 = vadd.f32 %v2585, %v2586
      %v2588 = vsel %vm1372, %v2558, %v2587
      %v2589 = vld [vmem:[%s4] sm:$0xff]
      %v2590 = vld [vmem:[%s4 + $0x8] sm:$0xff]
      %v2591 = vld [vmem:[%s4 + $0x10] sm:$0xff]
      %v2592 = vld [vmem:[%s4 + $0x18] sm:$0xff]
      %v2593 = vld [vmem:[%s4 + $0x20] sm:$0xff]
      %v2594 = vld [vmem:[%s4 + $0x28] sm:$0xff]
      %v2595 = vld [vmem:[%s4 + $0x30] sm:$0xff]
      %v2596 = vld [vmem:[%s4 + $0x38] sm:$0xff]
      %v2598 = vsel %vm1321, %v2588, 0
      %2600 = vmatprep.subr.mxu0 0.0
      %2601 = vmatpush1.msra.mxu0 %v2589
      %2602 = vmatprep.subr.mxu0 0.0
      %2603 = vmatpush1.msra.mxu0 %v2590
      %2604 = vmatprep.subr.mxu0 0.0
      %2605 = vmatpush1.msra.mxu0 %v2591
      %2606 = vmatprep.subr.mxu0 0.0
      %2607 = vmatpush1.msra.mxu0 %v2592
      %2608 = vmatprep.subr.mxu0 0.0
      %2609 = vmatpush1.msra.mxu0 %v2593
      %2610 = vmatprep.subr.mxu0 0.0
      %2611 = vmatpush1.msra.mxu0 %v2594
      %2612 = vmatprep.subr.mxu0 0.0
      %2613 = vmatpush1.msra.mxu0 %v2595
      %2614 = vmatprep.subr.mxu0 0.0
      %2615 = vmatpush1.msra.mxu0 %v2596
      %2616 = vmatprep.subr.mxu0 0.0
      %2617 = vmatpush1.msra.mxu0 0.0
      %2618 = vmatprep.subr.mxu0 0.0
      %2619 = vmatpush1.msra.mxu0 0.0
      %2620 = vmatprep.subr.mxu0 0.0
      %2621 = vmatpush1.msra.mxu0 0.0
      %2622 = vmatprep.subr.mxu0 0.0
      %2623 = vmatpush1.msra.mxu0 0.0
      %2624 = vmatprep.subr.mxu0 0.0
      %2625 = vmatpush1.msra.mxu0 0.0
      %2626 = vmatprep.subr.mxu0 0.0
      %2627 = vmatpush1.msra.mxu0 0.0
      %2628 = vmatprep.subr.mxu0 0.0
      %2629 = vmatpush1.msra.mxu0 0.0
      %2630 = vmatprep.subr.mxu0 0.0
      %2631 = vmatpush1.msra.mxu0 0.0
      %2632 = vmatprep.subr.mxu0 0.0
      %2633 = vmatpush1.msra.mxu0 0.0
      %2634 = vmatprep.subr.mxu0 0.0
      %2635 = vmatpush1.msra.mxu0 0.0
      %2636 = vmatprep.subr.mxu0 0.0
      %2637 = vmatpush1.msra.mxu0 0.0
      %2638 = vmatprep.subr.mxu0 0.0
      %2639 = vmatpush1.msra.mxu0 0.0
      %2640 = vmatprep.subr.mxu0 0.0
      %2641 = vmatpush1.msra.mxu0 0.0
      %2642 = vmatprep.subr.mxu0 0.0
      %2643 = vmatpush1.msra.mxu0 0.0
      %2644 = vmatprep.subr.mxu0 0.0
      %2645 = vmatpush1.msra.mxu0 0.0
      %2646 = vmatprep.subr.mxu0 0.0
      %2647 = vmatpush1.msra.mxu0 0.0
      %2648 = vmatprep.subr.mxu0 0.0
      %2649 = vmatpush1.msra.mxu0 0.0
      %2650 = vmatprep.subr.mxu0 0.0
      %2651 = vmatpush1.msra.mxu0 0.0
      %2652 = vmatprep.subr.mxu0 0.0
      %2653 = vmatpush1.msra.mxu0 0.0
      %2654 = vmatprep.subr.mxu0 0.0
      %2655 = vmatpush1.msra.mxu0 0.0
      %2656 = vmatprep.subr.mxu0 0.0
      %2657 = vmatpush1.msra.mxu0 0.0
      %2658 = vmatprep.subr.mxu0 0.0
      %2659 = vmatpush1.msra.mxu0 0.0
      %2660 = vmatprep.subr.mxu0 0.0
      %2661 = vmatpush1.msra.mxu0 0.0
      %2662 = vmatprep.subr.mxu0 0.0
      %2663 = vmatpush1.msra.mxu0 0.0
      %2664 = vmatprep.mubr.f32.mxu0 0.0
      %2665 = vmatmul.mubr.f32.gmra.mrb[0].mxu0 %v2598
      %v2666 = vpop.f32.mrb[0].mxu0
      %v2667 = vadd.f32 0.0, %v2666
      %v2668 = vpop.f32.mrb[0].mxu0
      %2669 = vdwg.mxu0
      %v2670 = vmul.f32 %v2667, 0.001953125
      %v2671 = vmul.f32 %v2670, %v2670
      %v2673 = vrot.slane %v2671, 7
      %v2675 = vsub.f32 %v2670, %v2673
      %v2676 = vmax.f32 %v2675, 0.0
      %v2677 = vadd.f32 %v2676, 1e-05
      %v2678 = vrsqrt.pop %v2677
      %v2679 = vlaneseq
      %v2680 = vshrl.u32 %v2679, 7
      %v2681 = vsub.s32 0, %v2680
      %v2682 = vrot.slane %v2670, %v2681
      %v2683 = vsub.f32 %v2508, %v2682
      %v2684 = vsub.f32 %v2511, %v2682
      %v2685 = vsub.f32 %v2516, %v2682
      %v2686 = vsub.f32 %v2519, %v2682
      %v2687 = vsub.f32 %v2524, %v2682
      %v2688 = vsub.f32 %v2527, %v2682
      %v2689 = vsub.f32 %v2532, %v2682
      %v2690 = vsub.f32 %v2535, %v2682
      %v2691 = vlaneseq
      %v2692 = vshrl.u32 %v2691, 7
      %v2693 = vsub.s32 1, %v2692
      %v2694 = vrot.slane %v2678, %v2693
      %v2695 = vmul.f32 %v2683, %v2694
      %v2696 = vmul.f32 %v2684, %v2694
      %v2697 = vmul.f32 %v2685, %v2694
      %v2698 = vmul.f32 %v2686, %v2694
      %v2699 = vmul.f32 %v2687, %v2694
      %v2700 = vmul.f32 %v2688, %v2694
      %v2701 = vmul.f32 %v2689, %v2694
      %v2702 = vmul.f32 %v2690, %v2694
      %2711 = vrot.lane.b32.xlu0 %v1313, 64
      %v2712 = vpop.permute.xlu0 %2711
      %2713 = vrot.lane.b32.xlu0 %v1314, 64
      %v2714 = vpop.permute.xlu0 %2713
      %2715 = vrot.lane.b32.xlu0 %v1315, 64
      %v2716 = vpop.permute.xlu0 %2715
      %2717 = vrot.lane.b32.xlu0 %v1316, 64
      %v2718 = vpop.permute.xlu0 %2717
      %2719 = vrot.lane.b32.xlu0 %v1317, 64
      %v2720 = vpop.permute.xlu0 %2719
      %2721 = vrot.lane.b32.xlu0 %v1318, 64
      %v2722 = vpop.permute.xlu0 %2721
      %2723 = vrot.lane.b32.xlu0 %v1319, 64
      %v2724 = vpop.permute.xlu0 %2723
      %2725 = vrot.lane.b32.xlu0 %v1320, 64
      %v2726 = vpop.permute.xlu0 %2725
      %v2735 = vadd.f32 %v2695, %v2712
      %v2736 = vadd.f32 %v2696, %v2714
      %v2737 = vadd.f32 %v2697, %v2716
      %v2738 = vadd.f32 %v2698, %v2718
      %v2739 = vadd.f32 %v2699, %v2720
      %v2740 = vadd.f32 %v2700, %v2722
      %v2741 = vadd.f32 %v2701, %v2724
      %v2742 = vadd.f32 %v2702, %v2726
      %vm2743 = vcmp.ge.f32.partialorder %v2735, 0.0
      %vm2744 = vcmp.ge.f32.partialorder %v2736, 0.0
      %vm2745 = vcmp.ge.f32.partialorder %v2737, 0.0
      %vm2746 = vcmp.ge.f32.partialorder %v2738, 0.0
      %vm2747 = vcmp.ge.f32.partialorder %v2739, 0.0
      %vm2748 = vcmp.ge.f32.partialorder %v2740, 0.0
      %vm2749 = vcmp.ge.f32.partialorder %v2741, 0.0
      %vm2750 = vcmp.ge.f32.partialorder %v2742, 0.0
      %v2751 = vmul.f32 %v2735, 0.0
      %v2752 = vmul.f32 %v2736, 0.0
      %v2753 = vmul.f32 %v2737, 0.0
      %v2754 = vmul.f32 %v2738, 0.0
      %v2755 = vmul.f32 %v2739, 0.0
      %v2756 = vmul.f32 %v2740, 0.0
      %v2757 = vmul.f32 %v2741, 0.0
      %v2758 = vmul.f32 %v2742, 0.0
      %v2759 = vsel %vm2743, %v2735, %v2751
      %v2760 = vsel %vm2744, %v2736, %v2752
      %v2761 = vsel %vm2745, %v2737, %v2753
      %v2762 = vsel %vm2746, %v2738, %v2754
      %v2763 = vsel %vm2747, %v2739, %v2755
      %v2764 = vsel %vm2748, %v2740, %v2756
      %v2765 = vsel %vm2749, %v2741, %v2757
      %v2766 = vsel %vm2750, %v2742, %v2758
      %2767 = vst.msk [vmem:[%s224] sm:$0xff] %vm1321, %v2759
      %2768 = vst.msk [vmem:[%s224 + $0x8] sm:$0xff] %vm1321, %v2760
      %2769 = vst.msk [vmem:[%s224 + $0x10] sm:$0xff] %vm1321, %v2761
      %2770 = vst.msk [vmem:[%s224 + $0x18] sm:$0xff] %vm1321, %v2762
      %2771 = vst.msk [vmem:[%s224 + $0x20] sm:$0xff] %vm1321, %v2763
      %2772 = vst.msk [vmem:[%s224 + $0x28] sm:$0xff] %vm1321, %v2764
      %2773 = vst.msk [vmem:[%s224 + $0x30] sm:$0xff] %vm1321, %v2765
      %2774 = vst.msk [vmem:[%s224 + $0x38] sm:$0xff] %vm1321, %v2766
      %p2775 = scmp.lt.s32.totalorder %s16, 1
      %s2776 = scalar_select %p2775, %s16, 1
      %s2777 = smul.addr %s2776, 8
      %s2778 = smul.addr %s2777, 8
      %s2779 = scalar_lea.vmem %s5, %s2778
      // Predicated region
      $region41: #{atrous_ii_block.1} parent=39 // pred_check
        %p2780 = pneg %p144
      $region42: #{atrous_ii_block.1} parent=39 // pred_check_branch
        %2782 = sbr.rel (%p2780) target = $region44
      $region43: #{atrous_ii_block.1} parent=39 // pred_region
        _
      $region44: #{atrous_ii_block.1} parent=39 // pred_fallthru
        _
    $region40: #{atrous_ii_block.1} parent=5 // pred_fallthru
      _
    %p2783 = scmp.le.s32.totalorder 2, %s11
    // Predicated region
    $region45: #{atrous_ii_block.1} parent=5 // pred_check
      %p2784 = pneg %p2783
    $region46: #{atrous_ii_block.1} parent=5 // pred_check_branch
      %2786 = sbr.rel (%p2784) target = $region48
    $region47: #{atrous_ii_block.1} parent=5 // pred_region
      %s2787 = ssub.s32 %s11, 2
      // Predicated region
      $region49: #{atrous_ii_block.1} parent=47 // pred_check
        %p2788 = pneg %p150
      $region50: #{atrous_ii_block.1} parent=47 // pred_check_branch
        %2790 = sbr.rel (%p2788) target = $region52
      $region51: #{atrous_ii_block.1} parent=47 // pred_region
        %p2791 = scmp.lt.s32.totalorder %s17, 1
        %s2792 = scalar_select %p2791, %s17, 1
        %s2793 = smul.addr %s2792, 8
        %s2794 = smul.addr %s2793, 8
        %s2795 = scalar_lea.vmem %s5, %s2794
      $region52: #{atrous_ii_block.1} parent=47 // pred_fallthru
        _
    $region48: #{atrous_ii_block.1} parent=5 // pred_fallthru
      _
  $region6: #{atrous_ii_block.1} parent=0 // loop_footer
    %s15 = sadd.s32 1, %s11
  $region7: #{atrous_ii_block.1} parent=0 // loop_footer_branch
    %10 = sbr.rel target = $region3
  $region8: #{atrous_ii_block.1} parent=0 // loop_exit
    _

</llo_original>
